<compile_context>
chip_gen: v7x
topology: tpu7x:2x2x1
jax: 0.10.0
libtpu: 0.0.40
codegen_flags: <defaults>
</compile_context>

<pallas_src>
import math

import jax
import jax.numpy as jnp
from jax import lax
from jax.experimental import pallas as pl
from jax.experimental.pallas import tpu as pltpu


def embed_atten_seq_kernel(
    seqs_ref, meta_ref,
    w_ih_t_ref, w_hh_t_ref, b_gi_ref, b_hn_ref,
    w_vqk_t_ref, b_vqk_ref,
    wo_seq_t_ref, wo_meta_t_ref, bo_ref,
    out_ref, hid_ref,
):
    S, B, Din = seqs_ref.shape
    H = w_hh_t_ref.shape[0]          # rnn_out
    SB = S * B

    # ---- GRU: input projection for ALL timesteps as one matmul (off the serial path).
    # b_gi already contains b_ih (all gates) + b_hh (r, z gates only).
    x_flat = seqs_ref[...].reshape(SB, Din)                       # free leading-dim merge
    gi_all = jnp.dot(x_flat, w_ih_t_ref[...],
                     preferred_element_type=jnp.float32) + b_gi_ref[...]   # (S*B, 3H)

    w_hh_t = w_hh_t_ref[...]                                      # (H, 3H)
    b_hn = b_hn_ref[...]                                          # (1, H), n-gate hidden bias

    # ---- GRU recurrence (PyTorch gate order: r, z, n), statically unrolled ----
    h = jnp.zeros((B, H), jnp.float32)
    hs = []
    for t in range(S):
        gi = gi_all[t * B:(t + 1) * B, :]                         # static row slice
        gh = jnp.dot(h, w_hh_t, preferred_element_type=jnp.float32)   # no bias on hot path
        r = jax.nn.sigmoid(gi[:, 0:H] + gh[:, 0:H])
        z = jax.nn.sigmoid(gi[:, H:2 * H] + gh[:, H:2 * H])
        n = jnp.tanh(gi[:, 2 * H:3 * H] + r * (gh[:, 2 * H:3 * H] + b_hn))
        h = (1.0 - z) * n + z * h
        hs.append(h)

    hid_ref[0] = h.astype(hid_ref.dtype)                          # encoder_hidden (1, B, H)

    # Latent sequence in registers, s-major flat layout: row s*B + b  <->  latent[s, b, :]
    latent = jnp.concatenate(hs, axis=0)                          # (S*B, H)

    # ---- TransformerAttn: fused V/Q/K projection (one matmul) ----
    vqk = jnp.dot(latent, w_vqk_t_ref[...],
                  preferred_element_type=jnp.float32) + b_vqk_ref[...]     # (S*B, 3H)
    value = vqk[:, 0:H]
    query = vqk[:, H:2 * H]
    keys = vqk[:, 2 * H:3 * H]

    # Dense (S*B, S*B) logits with a batch-identity mask replaces tiny batched matmuls.
    scale = 1.0 / math.sqrt(H)
    logits = lax.dot_general(value, query, (((1,), (1,)), ((), ())),
                             preferred_element_type=jnp.float32) * scale   # (S*B, S*B)
    row_b = lax.broadcasted_iota(jnp.int32, (SB, SB), 0) % B
    col_b = lax.broadcasted_iota(jnp.int32, (SB, SB), 1) % B
    logits = jnp.where(row_b == col_b, logits, -1e30)

    m = jnp.max(logits, axis=-1, keepdims=True)
    e = jnp.exp(logits - m)
    denom = jnp.sum(e, axis=-1, keepdims=True)
    weights = e * pl.reciprocal(denom, approx=True)               # softmax over t (masked)

    # Fold the sum over the query (s) axis:  summed[b] = sum_s sum_t w[b,s,t] * keys[t,b]
    # sel[b, i] = 1 iff row i of `weights` belongs to batch b (i % B == b).
    sel = (lax.broadcasted_iota(jnp.int32, (B, SB), 1) % B
           == lax.broadcasted_iota(jnp.int32, (B, SB), 0)).astype(jnp.float32)
    w_sum = jnp.dot(sel, weights, preferred_element_type=jnp.float32)      # (B, S*B)
    summed = jnp.dot(w_sum, keys, preferred_element_type=jnp.float32)      # (B, H)

    # ---- out_layer: Linear(H+M -> O) + Tanh (concat folded into split matmul) ----
    pre = (jnp.dot(summed, wo_seq_t_ref[...], preferred_element_type=jnp.float32)
           + jnp.dot(meta_ref[...], wo_meta_t_ref[...], preferred_element_type=jnp.float32)
           + bo_ref[...])
    out_ref[...] = jnp.tanh(pre).astype(out_ref.dtype)


def _full_spec(shape):
    nd = len(shape)
    return pl.BlockSpec(shape, lambda i, _nd=nd: (0,) * _nd)


def embed_atten_seq_forward(seqs, metadata, pk):
    """pk = packed (pre-transposed / pre-fused) params from pack_params()."""
    S, B, Din = seqs.shape
    H = pk['w_hh_t'].shape[0]
    O = pk['bo'].shape[1]

    args = (seqs, metadata,
            pk['w_ih_t'], pk['w_hh_t'], pk['b_gi'], pk['b_hn'],
            pk['w_vqk_t'], pk['b_vqk'],
            pk['wo_seq_t'], pk['wo_meta_t'], pk['bo'])

    out, hidden = pl.pallas_call(
        embed_atten_seq_kernel,
        grid=(1,),
        in_specs=[_full_spec(a.shape) for a in args],
        out_specs=(_full_spec((B, O)), _full_spec((1, B, H))),
        out_shape=(jax.ShapeDtypeStruct((B, O), jnp.float32),
                   jax.ShapeDtypeStruct((1, B, H), jnp.float32)),
        compiler_params=pltpu.CompilerParams(
            dimension_semantics=("arbitrary",)),
    )(*args)
    return out, hidden


def init_params(key, dim_seq_in=5, dim_metadata=3, rnn_out=40, dim_out=50):
    """PyTorch-layout parameters (same as nn.GRU / nn.Linear)."""
    H = rnn_out
    ks = jax.random.split(key, 11)

    def u(k, shape, scale):
        return jax.random.uniform(k, shape, jnp.float32, -1.0, 1.0) * scale

    s_gru = 1.0 / math.sqrt(H)
    s_lin = 1.0 / math.sqrt(H)
    xav = math.sqrt(6.0 / (H + dim_metadata + dim_out))
    return dict(
        w_ih=u(ks[0], (3 * H, dim_seq_in), s_gru),
        w_hh=u(ks[1], (3 * H, H), s_gru),
        b_ih=u(ks[2], (1, 3 * H), s_gru),
        b_hh=u(ks[3], (1, 3 * H), s_gru),
        wv=u(ks[4], (H, H), s_lin), bv=u(ks[5], (1, H), s_lin),
        wq=u(ks[6], (H, H), s_lin), bq=u(ks[7], (1, H), s_lin),
        wk=u(ks[8], (H, H), s_lin), bk=u(ks[9], (1, H), s_lin),
        wo=u(ks[10], (dim_out, H + dim_metadata), xav),
        bo=jnp.full((1, dim_out), 0.01, jnp.float32),
    )


def pack_params(p):
    """One-time packing: pre-transpose weights, fuse V/Q/K, split output weight,
    fold the r/z recurrent biases into the hoisted input-projection bias."""
    H = p['w_hh'].shape[1]
    # b_gi: b_ih (all gates) + b_hh for r,z gates (the n-gate hidden bias stays inside r*(.)).
    b_gi = jnp.concatenate(
        [p['b_ih'][:, :2 * H] + p['b_hh'][:, :2 * H], p['b_ih'][:, 2 * H:]], axis=1)
    return dict(
        w_ih_t=jnp.asarray(p['w_ih'].T),                                    # (Din, 3H)
        w_hh_t=jnp.asarray(p['w_hh'].T),                                    # (H, 3H)
        b_gi=b_gi,                                                          # (1, 3H)
        b_hn=jnp.asarray(p['b_hh'][:, 2 * H:]),                             # (1, H)
        w_vqk_t=jnp.concatenate([p['wv'].T, p['wq'].T, p['wk'].T], axis=1),  # (H, 3H)
        b_vqk=jnp.concatenate([p['bv'], p['bq'], p['bk']], axis=1),          # (1, 3H)
        wo_seq_t=jnp.asarray(p['wo'][:, :H].T),                              # (H, O)
        wo_meta_t=jnp.asarray(p['wo'][:, H:].T),                             # (M, O)
        bo=p['bo'],
    )


def ref_forward(seqs, metadata, p):
    """Pure-JAX reference matching the PyTorch forward exactly."""
    S, B, Din = seqs.shape
    H = p['w_hh'].shape[1]

    def step(h, x):
        gi = x @ p['w_ih'].T + p['b_ih'][0]
        gh = h @ p['w_hh'].T + p['b_hh'][0]
        r = jax.nn.sigmoid(gi[:, :H] + gh[:, :H])
        z = jax.nn.sigmoid(gi[:, H:2 * H] + gh[:, H:2 * H])
        n = jnp.tanh(gi[:, 2 * H:] + r * gh[:, 2 * H:])
        h_new = (1.0 - z) * n + z * h
        return h_new, h_new

    h_last, latent = lax.scan(step, jnp.zeros((B, H), jnp.float32), seqs)
    seq_in = jnp.transpose(latent, (1, 0, 2))               # (B, S, H)
    value = seq_in @ p['wv'].T + p['bv'][0]
    query = seq_in @ p['wq'].T + p['bq'][0]
    keys = seq_in @ p['wk'].T + p['bk'][0]
    w = (value @ jnp.swapaxes(query, 1, 2)) / math.sqrt(H)
    w = jax.nn.softmax(w, axis=-1)
    att = w @ keys                                          # (B, S, H)
    summed = att.sum(axis=1)
    out = jnp.tanh(jnp.concatenate([summed, metadata], axis=1) @ p['wo'].T + p['bo'][0])
    return out, h_last[None]


if __name__ == "__main__":
    key = jax.random.PRNGKey(0)
    k_params, k_seq, k_meta = jax.random.split(key, 3)

    S, B = 8, 8                       # B multiple of 8 -> full sublane utilization
    dim_seq_in, dim_metadata, rnn_out, dim_out = 5, 3, 40, 50

    params = init_params(k_params, dim_seq_in, dim_metadata, rnn_out, dim_out)
    packed = pack_params(params)      # pre-transposed / fused weights (done once)
    seqs = jax.random.normal(k_seq, (S, B, dim_seq_in), jnp.float32)
    metadata = jax.random.normal(k_meta, (B, dim_metadata), jnp.float32)

    out, hidden = embed_atten_seq_forward(seqs, metadata, packed)
    jax.block_until_ready((out, hidden))

    out_ref, hid_ref = ref_forward(seqs, metadata, params)
    assert out.shape == (B, dim_out) and hidden.shape == (1, B, rnn_out)
    assert jnp.allclose(out, out_ref, atol=2e-3, rtol=2e-3)
    assert jnp.allclose(hidden, hid_ref, atol=2e-3, rtol=2e-3)

    print("KERNEL_OK")
</pallas_src>

<mosaic_0001>
module attributes {stable_mosaic.version = 11 : i64} {
  func.func @embed_atten_seq_kernel(%arg0: i32, %arg1: memref<8x8x5xf32, #tpu.memory_space<vmem>>, %arg2: memref<8x3xf32, #tpu.memory_space<vmem>>, %arg3: memref<5x120xf32, #tpu.memory_space<vmem>>, %arg4: memref<40x120xf32, #tpu.memory_space<vmem>>, %arg5: memref<1x120xf32, #tpu.memory_space<vmem>>, %arg6: memref<1x40xf32, #tpu.memory_space<vmem>>, %arg7: memref<40x120xf32, #tpu.memory_space<vmem>>, %arg8: memref<1x120xf32, #tpu.memory_space<vmem>>, %arg9: memref<40x50xf32, #tpu.memory_space<vmem>>, %arg10: memref<3x50xf32, #tpu.memory_space<vmem>>, %arg11: memref<1x50xf32, #tpu.memory_space<vmem>>, %arg12: memref<8x50xf32, #tpu.memory_space<vmem>>, %arg13: memref<1x8x40xf32, #tpu.memory_space<vmem>>) attributes {dimension_semantics = [#tpu.dimension_semantics<arbitrary>], iteration_bounds = array<i64: 1>, scalar_prefetch = 0 : i64, scratch_operands = 0 : i64, tpu.core_type = #tpu.core_type<tc>, window_params = [{pipeline_mode = #tpu.pipeline_mode<synchronous>, transform_indices = @transform_0, window_bounds = array<i64: 8, 8, 5>}, {pipeline_mode = #tpu.pipeline_mode<synchronous>, transform_indices = @transform_1, window_bounds = array<i64: 8, 3>}, {pipeline_mode = #tpu.pipeline_mode<synchronous>, transform_indices = @transform_2, window_bounds = array<i64: 5, 120>}, {pipeline_mode = #tpu.pipeline_mode<synchronous>, transform_indices = @transform_3, window_bounds = array<i64: 40, 120>}, {pipeline_mode = #tpu.pipeline_mode<synchronous>, transform_indices = @transform_4, window_bounds = array<i64: 1, 120>}, {pipeline_mode = #tpu.pipeline_mode<synchronous>, transform_indices = @transform_5, window_bounds = array<i64: 1, 40>}, {pipeline_mode = #tpu.pipeline_mode<synchronous>, transform_indices = @transform_6, window_bounds = array<i64: 40, 120>}, {pipeline_mode = #tpu.pipeline_mode<synchronous>, transform_indices = @transform_7, window_bounds = array<i64: 1, 120>}, {pipeline_mode = #tpu.pipeline_mode<synchronous>, transform_indices = @transform_8, window_bounds = array<i64: 40, 50>}, {pipeline_mode = #tpu.pipeline_mode<synchronous>, transform_indices = @transform_9, window_bounds = array<i64: 3, 50>}, {pipeline_mode = #tpu.pipeline_mode<synchronous>, transform_indices = @transform_10, window_bounds = array<i64: 1, 50>}, {pipeline_mode = #tpu.pipeline_mode<synchronous>, transform_indices = @transform_11, window_bounds = array<i64: 8, 50>}, {pipeline_mode = #tpu.pipeline_mode<synchronous>, transform_indices = @transform_12, window_bounds = array<i64: 1, 8, 40>}]} {
    %c0 = arith.constant 0 : index
    %c0_0 = arith.constant 0 : index
    %c0_1 = arith.constant 0 : index
    %0 = vector.load %arg1[%c0, %c0_0, %c0_1] : memref<8x8x5xf32, #tpu.memory_space<vmem>>, vector<8x8x5xf32>
    %1 = vector.shape_cast %0 : vector<8x8x5xf32> to vector<64x5xf32>
    %c0_2 = arith.constant 0 : index
    %c0_3 = arith.constant 0 : index
    %2 = vector.load %arg3[%c0_2, %c0_3] : memref<5x120xf32, #tpu.memory_space<vmem>>, vector<5x120xf32>
    %cst = arith.constant dense<0.000000e+00> : vector<64x120xf32>
    %3 = tpu.matmul %1, %2, %cst {dimension_numbers = #tpu.dot_dimension_numbers<[1], [0], [0], [1], [0, 0, 1, 1], [], []>} : vector<64x5xf32>, vector<5x120xf32>, vector<64x120xf32> -> vector<64x120xf32>
    %c0_4 = arith.constant 0 : index
    %c0_5 = arith.constant 0 : index
    %4 = vector.load %arg5[%c0_4, %c0_5] : memref<1x120xf32, #tpu.memory_space<vmem>>, vector<1x120xf32>
    %5 = vector.broadcast %4 : vector<1x120xf32> to vector<64x120xf32>
    %6 = arith.addf %3, %5 : vector<64x120xf32>
    %c0_6 = arith.constant 0 : index
    %c0_7 = arith.constant 0 : index
    %7 = vector.load %arg4[%c0_6, %c0_7] : memref<40x120xf32, #tpu.memory_space<vmem>>, vector<40x120xf32>
    %c0_8 = arith.constant 0 : index
    %c0_9 = arith.constant 0 : index
    %8 = vector.load %arg6[%c0_8, %c0_9] : memref<1x40xf32, #tpu.memory_space<vmem>>, vector<1x40xf32>
    %cst_10 = arith.constant 0.000000e+00 : f32
    %9 = vector.broadcast %cst_10 : f32 to vector<8x40xf32>
    %10 = vector.extract_strided_slice %6 {offsets = [0, 0], sizes = [8, 120], strides = [1, 1]} : vector<64x120xf32> to vector<8x120xf32>
    %cst_11 = arith.constant dense<0.000000e+00> : vector<8x120xf32>
    %11 = tpu.matmul %9, %7, %cst_11 {dimension_numbers = #tpu.dot_dimension_numbers<[1], [0], [0], [1], [0, 0, 1, 1], [], []>} : vector<8x40xf32>, vector<40x120xf32>, vector<8x120xf32> -> vector<8x120xf32>
    %12 = vector.extract_strided_slice %10 {offsets = [0, 0], sizes = [8, 40], strides = [1, 1]} : vector<8x120xf32> to vector<8x40xf32>
    %13 = vector.extract_strided_slice %11 {offsets = [0, 0], sizes = [8, 40], strides = [1, 1]} : vector<8x120xf32> to vector<8x40xf32>
    %14 = arith.addf %12, %13 : vector<8x40xf32>
    %15 = arith.negf %14 : vector<8x40xf32>
    %16 = math.exp %15 : vector<8x40xf32>
    %cst_12 = arith.constant 1.000000e+00 : f32
    %17 = vector.broadcast %cst_12 : f32 to vector<8x40xf32>
    %18 = arith.addf %17, %16 : vector<8x40xf32>
    %19 = arith.divf %17, %18 : vector<8x40xf32>
    %20 = vector.extract_strided_slice %10 {offsets = [0, 40], sizes = [8, 40], strides = [1, 1]} : vector<8x120xf32> to vector<8x40xf32>
    %21 = vector.extract_strided_slice %11 {offsets = [0, 40], sizes = [8, 40], strides = [1, 1]} : vector<8x120xf32> to vector<8x40xf32>
    %22 = arith.addf %20, %21 : vector<8x40xf32>
    %23 = arith.negf %22 : vector<8x40xf32>
    %24 = math.exp %23 : vector<8x40xf32>
    %cst_13 = arith.constant 1.000000e+00 : f32
    %25 = vector.broadcast %cst_13 : f32 to vector<8x40xf32>
    %26 = arith.addf %25, %24 : vector<8x40xf32>
    %27 = arith.divf %25, %26 : vector<8x40xf32>
    %28 = vector.extract_strided_slice %10 {offsets = [0, 80], sizes = [8, 40], strides = [1, 1]} : vector<8x120xf32> to vector<8x40xf32>
    %29 = vector.extract_strided_slice %11 {offsets = [0, 80], sizes = [8, 40], strides = [1, 1]} : vector<8x120xf32> to vector<8x40xf32>
    %30 = vector.broadcast %8 : vector<1x40xf32> to vector<8x40xf32>
    %31 = arith.addf %29, %30 : vector<8x40xf32>
    %32 = arith.mulf %19, %31 : vector<8x40xf32>
    %33 = arith.addf %28, %32 : vector<8x40xf32>
    %34 = math.tanh %33 : vector<8x40xf32>
    %cst_14 = arith.constant 1.000000e+00 : f32
    %35 = vector.broadcast %cst_14 : f32 to vector<8x40xf32>
    %36 = arith.subf %35, %27 : vector<8x40xf32>
    %37 = arith.mulf %36, %34 : vector<8x40xf32>
    %38 = arith.mulf %27, %9 : vector<8x40xf32>
    %39 = arith.addf %37, %38 : vector<8x40xf32>
    %40 = vector.extract_strided_slice %6 {offsets = [8, 0], sizes = [8, 120], strides = [1, 1]} : vector<64x120xf32> to vector<8x120xf32>
    %cst_15 = arith.constant dense<0.000000e+00> : vector<8x120xf32>
    %41 = tpu.matmul %39, %7, %cst_15 {dimension_numbers = #tpu.dot_dimension_numbers<[1], [0], [0], [1], [0, 0, 1, 1], [], []>} : vector<8x40xf32>, vector<40x120xf32>, vector<8x120xf32> -> vector<8x120xf32>
    %42 = vector.extract_strided_slice %40 {offsets = [0, 0], sizes = [8, 40], strides = [1, 1]} : vector<8x120xf32> to vector<8x40xf32>
    %43 = vector.extract_strided_slice %41 {offsets = [0, 0], sizes = [8, 40], strides = [1, 1]} : vector<8x120xf32> to vector<8x40xf32>
    %44 = arith.addf %42, %43 : vector<8x40xf32>
    %45 = arith.negf %44 : vector<8x40xf32>
    %46 = math.exp %45 : vector<8x40xf32>
    %cst_16 = arith.constant 1.000000e+00 : f32
    %47 = vector.broadcast %cst_16 : f32 to vector<8x40xf32>
    %48 = arith.addf %47, %46 : vector<8x40xf32>
    %49 = arith.divf %47, %48 : vector<8x40xf32>
    %50 = vector.extract_strided_slice %40 {offsets = [0, 40], sizes = [8, 40], strides = [1, 1]} : vector<8x120xf32> to vector<8x40xf32>
    %51 = vector.extract_strided_slice %41 {offsets = [0, 40], sizes = [8, 40], strides = [1, 1]} : vector<8x120xf32> to vector<8x40xf32>
    %52 = arith.addf %50, %51 : vector<8x40xf32>
    %53 = arith.negf %52 : vector<8x40xf32>
    %54 = math.exp %53 : vector<8x40xf32>
    %cst_17 = arith.constant 1.000000e+00 : f32
    %55 = vector.broadcast %cst_17 : f32 to vector<8x40xf32>
    %56 = arith.addf %55, %54 : vector<8x40xf32>
    %57 = arith.divf %55, %56 : vector<8x40xf32>
    %58 = vector.extract_strided_slice %40 {offsets = [0, 80], sizes = [8, 40], strides = [1, 1]} : vector<8x120xf32> to vector<8x40xf32>
    %59 = vector.extract_strided_slice %41 {offsets = [0, 80], sizes = [8, 40], strides = [1, 1]} : vector<8x120xf32> to vector<8x40xf32>
    %60 = vector.broadcast %8 : vector<1x40xf32> to vector<8x40xf32>
    %61 = arith.addf %59, %60 : vector<8x40xf32>
    %62 = arith.mulf %49, %61 : vector<8x40xf32>
    %63 = arith.addf %58, %62 : vector<8x40xf32>
    %64 = math.tanh %63 : vector<8x40xf32>
    %cst_18 = arith.constant 1.000000e+00 : f32
    %65 = vector.broadcast %cst_18 : f32 to vector<8x40xf32>
    %66 = arith.subf %65, %57 : vector<8x40xf32>
    %67 = arith.mulf %66, %64 : vector<8x40xf32>
    %68 = arith.mulf %57, %39 : vector<8x40xf32>
    %69 = arith.addf %67, %68 : vector<8x40xf32>
    %70 = vector.extract_strided_slice %6 {offsets = [16, 0], sizes = [8, 120], strides = [1, 1]} : vector<64x120xf32> to vector<8x120xf32>
    %cst_19 = arith.constant dense<0.000000e+00> : vector<8x120xf32>
    %71 = tpu.matmul %69, %7, %cst_19 {dimension_numbers = #tpu.dot_dimension_numbers<[1], [0], [0], [1], [0, 0, 1, 1], [], []>} : vector<8x40xf32>, vector<40x120xf32>, vector<8x120xf32> -> vector<8x120xf32>
    %72 = vector.extract_strided_slice %70 {offsets = [0, 0], sizes = [8, 40], strides = [1, 1]} : vector<8x120xf32> to vector<8x40xf32>
    %73 = vector.extract_strided_slice %71 {offsets = [0, 0], sizes = [8, 40], strides = [1, 1]} : vector<8x120xf32> to vector<8x40xf32>
    %74 = arith.addf %72, %73 : vector<8x40xf32>
    %75 = arith.negf %74 : vector<8x40xf32>
    %76 = math.exp %75 : vector<8x40xf32>
    %cst_20 = arith.constant 1.000000e+00 : f32
    %77 = vector.broadcast %cst_20 : f32 to vector<8x40xf32>
    %78 = arith.addf %77, %76 : vector<8x40xf32>
    %79 = arith.divf %77, %78 : vector<8x40xf32>
    %80 = vector.extract_strided_slice %70 {offsets = [0, 40], sizes = [8, 40], strides = [1, 1]} : vector<8x120xf32> to vector<8x40xf32>
    %81 = vector.extract_strided_slice %71 {offsets = [0, 40], sizes = [8, 40], strides = [1, 1]} : vector<8x120xf32> to vector<8x40xf32>
    %82 = arith.addf %80, %81 : vector<8x40xf32>
    %83 = arith.negf %82 : vector<8x40xf32>
    %84 = math.exp %83 : vector<8x40xf32>
    %cst_21 = arith.constant 1.000000e+00 : f32
    %85 = vector.broadcast %cst_21 : f32 to vector<8x40xf32>
    %86 = arith.addf %85, %84 : vector<8x40xf32>
    %87 = arith.divf %85, %86 : vector<8x40xf32>
    %88 = vector.extract_strided_slice %70 {offsets = [0, 80], sizes = [8, 40], strides = [1, 1]} : vector<8x120xf32> to vector<8x40xf32>
    %89 = vector.extract_strided_slice %71 {offsets = [0, 80], sizes = [8, 40], strides = [1, 1]} : vector<8x120xf32> to vector<8x40xf32>
    %90 = vector.broadcast %8 : vector<1x40xf32> to vector<8x40xf32>
    %91 = arith.addf %89, %90 : vector<8x40xf32>
    %92 = arith.mulf %79, %91 : vector<8x40xf32>
    %93 = arith.addf %88, %92 : vector<8x40xf32>
    %94 = math.tanh %93 : vector<8x40xf32>
    %cst_22 = arith.constant 1.000000e+00 : f32
    %95 = vector.broadcast %cst_22 : f32 to vector<8x40xf32>
    %96 = arith.subf %95, %87 : vector<8x40xf32>
    %97 = arith.mulf %96, %94 : vector<8x40xf32>
    %98 = arith.mulf %87, %69 : vector<8x40xf32>
    %99 = arith.addf %97, %98 : vector<8x40xf32>
    %100 = vector.extract_strided_slice %6 {offsets = [24, 0], sizes = [8, 120], strides = [1, 1]} : vector<64x120xf32> to vector<8x120xf32>
    %cst_23 = arith.constant dense<0.000000e+00> : vector<8x120xf32>
    %101 = tpu.matmul %99, %7, %cst_23 {dimension_numbers = #tpu.dot_dimension_numbers<[1], [0], [0], [1], [0, 0, 1, 1], [], []>} : vector<8x40xf32>, vector<40x120xf32>, vector<8x120xf32> -> vector<8x120xf32>
    %102 = vector.extract_strided_slice %100 {offsets = [0, 0], sizes = [8, 40], strides = [1, 1]} : vector<8x120xf32> to vector<8x40xf32>
    %103 = vector.extract_strided_slice %101 {offsets = [0, 0], sizes = [8, 40], strides = [1, 1]} : vector<8x120xf32> to vector<8x40xf32>
    %104 = arith.addf %102, %103 : vector<8x40xf32>
    %105 = arith.negf %104 : vector<8x40xf32>
    %106 = math.exp %105 : vector<8x40xf32>
    %cst_24 = arith.constant 1.000000e+00 : f32
    %107 = vector.broadcast %cst_24 : f32 to vector<8x40xf32>
    %108 = arith.addf %107, %106 : vector<8x40xf32>
    %109 = arith.divf %107, %108 : vector<8x40xf32>
    %110 = vector.extract_strided_slice %100 {offsets = [0, 40], sizes = [8, 40], strides = [1, 1]} : vector<8x120xf32> to vector<8x40xf32>
    %111 = vector.extract_strided_slice %101 {offsets = [0, 40], sizes = [8, 40], strides = [1, 1]} : vector<8x120xf32> to vector<8x40xf32>
    %112 = arith.addf %110, %111 : vector<8x40xf32>
    %113 = arith.negf %112 : vector<8x40xf32>
    %114 = math.exp %113 : vector<8x40xf32>
    %cst_25 = arith.constant 1.000000e+00 : f32
    %115 = vector.broadcast %cst_25 : f32 to vector<8x40xf32>
    %116 = arith.addf %115, %114 : vector<8x40xf32>
    %117 = arith.divf %115, %116 : vector<8x40xf32>
    %118 = vector.extract_strided_slice %100 {offsets = [0, 80], sizes = [8, 40], strides = [1, 1]} : vector<8x120xf32> to vector<8x40xf32>
    %119 = vector.extract_strided_slice %101 {offsets = [0, 80], sizes = [8, 40], strides = [1, 1]} : vector<8x120xf32> to vector<8x40xf32>
    %120 = vector.broadcast %8 : vector<1x40xf32> to vector<8x40xf32>
    %121 = arith.addf %119, %120 : vector<8x40xf32>
    %122 = arith.mulf %109, %121 : vector<8x40xf32>
    %123 = arith.addf %118, %122 : vector<8x40xf32>
    %124 = math.tanh %123 : vector<8x40xf32>
    %cst_26 = arith.constant 1.000000e+00 : f32
    %125 = vector.broadcast %cst_26 : f32 to vector<8x40xf32>
    %126 = arith.subf %125, %117 : vector<8x40xf32>
    %127 = arith.mulf %126, %124 : vector<8x40xf32>
    %128 = arith.mulf %117, %99 : vector<8x40xf32>
    %129 = arith.addf %127, %128 : vector<8x40xf32>
    %130 = vector.extract_strided_slice %6 {offsets = [32, 0], sizes = [8, 120], strides = [1, 1]} : vector<64x120xf32> to vector<8x120xf32>
    %cst_27 = arith.constant dense<0.000000e+00> : vector<8x120xf32>
    %131 = tpu.matmul %129, %7, %cst_27 {dimension_numbers = #tpu.dot_dimension_numbers<[1], [0], [0], [1], [0, 0, 1, 1], [], []>} : vector<8x40xf32>, vector<40x120xf32>, vector<8x120xf32> -> vector<8x120xf32>
    %132 = vector.extract_strided_slice %130 {offsets = [0, 0], sizes = [8, 40], strides = [1, 1]} : vector<8x120xf32> to vector<8x40xf32>
    %133 = vector.extract_strided_slice %131 {offsets = [0, 0], sizes = [8, 40], strides = [1, 1]} : vector<8x120xf32> to vector<8x40xf32>
    %134 = arith.addf %132, %133 : vector<8x40xf32>
    %135 = arith.negf %134 : vector<8x40xf32>
    %136 = math.exp %135 : vector<8x40xf32>
    %cst_28 = arith.constant 1.000000e+00 : f32
    %137 = vector.broadcast %cst_28 : f32 to vector<8x40xf32>
    %138 = arith.addf %137, %136 : vector<8x40xf32>
    %139 = arith.divf %137, %138 : vector<8x40xf32>
    %140 = vector.extract_strided_slice %130 {offsets = [0, 40], sizes = [8, 40], strides = [1, 1]} : vector<8x120xf32> to vector<8x40xf32>
    %141 = vector.extract_strided_slice %131 {offsets = [0, 40], sizes = [8, 40], strides = [1, 1]} : vector<8x120xf32> to vector<8x40xf32>
    %142 = arith.addf %140, %141 : vector<8x40xf32>
    %143 = arith.negf %142 : vector<8x40xf32>
    %144 = math.exp %143 : vector<8x40xf32>
    %cst_29 = arith.constant 1.000000e+00 : f32
    %145 = vector.broadcast %cst_29 : f32 to vector<8x40xf32>
    %146 = arith.addf %145, %144 : vector<8x40xf32>
    %147 = arith.divf %145, %146 : vector<8x40xf32>
    %148 = vector.extract_strided_slice %130 {offsets = [0, 80], sizes = [8, 40], strides = [1, 1]} : vector<8x120xf32> to vector<8x40xf32>
    %149 = vector.extract_strided_slice %131 {offsets = [0, 80], sizes = [8, 40], strides = [1, 1]} : vector<8x120xf32> to vector<8x40xf32>
    %150 = vector.broadcast %8 : vector<1x40xf32> to vector<8x40xf32>
    %151 = arith.addf %149, %150 : vector<8x40xf32>
    %152 = arith.mulf %139, %151 : vector<8x40xf32>
    %153 = arith.addf %148, %152 : vector<8x40xf32>
    %154 = math.tanh %153 : vector<8x40xf32>
    %cst_30 = arith.constant 1.000000e+00 : f32
    %155 = vector.broadcast %cst_30 : f32 to vector<8x40xf32>
    %156 = arith.subf %155, %147 : vector<8x40xf32>
    %157 = arith.mulf %156, %154 : vector<8x40xf32>
    %158 = arith.mulf %147, %129 : vector<8x40xf32>
    %159 = arith.addf %157, %158 : vector<8x40xf32>
    %160 = vector.extract_strided_slice %6 {offsets = [40, 0], sizes = [8, 120], strides = [1, 1]} : vector<64x120xf32> to vector<8x120xf32>
    %cst_31 = arith.constant dense<0.000000e+00> : vector<8x120xf32>
    %161 = tpu.matmul %159, %7, %cst_31 {dimension_numbers = #tpu.dot_dimension_numbers<[1], [0], [0], [1], [0, 0, 1, 1], [], []>} : vector<8x40xf32>, vector<40x120xf32>, vector<8x120xf32> -> vector<8x120xf32>
    %162 = vector.extract_strided_slice %160 {offsets = [0, 0], sizes = [8, 40], strides = [1, 1]} : vector<8x120xf32> to vector<8x40xf32>
    %163 = vector.extract_strided_slice %161 {offsets = [0, 0], sizes = [8, 40], strides = [1, 1]} : vector<8x120xf32> to vector<8x40xf32>
    %164 = arith.addf %162, %163 : vector<8x40xf32>
    %165 = arith.negf %164 : vector<8x40xf32>
    %166 = math.exp %165 : vector<8x40xf32>
    %cst_32 = arith.constant 1.000000e+00 : f32
    %167 = vector.broadcast %cst_32 : f32 to vector<8x40xf32>
    %168 = arith.addf %167, %166 : vector<8x40xf32>
    %169 = arith.divf %167, %168 : vector<8x40xf32>
    %170 = vector.extract_strided_slice %160 {offsets = [0, 40], sizes = [8, 40], strides = [1, 1]} : vector<8x120xf32> to vector<8x40xf32>
    %171 = vector.extract_strided_slice %161 {offsets = [0, 40], sizes = [8, 40], strides = [1, 1]} : vector<8x120xf32> to vector<8x40xf32>
    %172 = arith.addf %170, %171 : vector<8x40xf32>
    %173 = arith.negf %172 : vector<8x40xf32>
    %174 = math.exp %173 : vector<8x40xf32>
    %cst_33 = arith.constant 1.000000e+00 : f32
    %175 = vector.broadcast %cst_33 : f32 to vector<8x40xf32>
    %176 = arith.addf %175, %174 : vector<8x40xf32>
    %177 = arith.divf %175, %176 : vector<8x40xf32>
    %178 = vector.extract_strided_slice %160 {offsets = [0, 80], sizes = [8, 40], strides = [1, 1]} : vector<8x120xf32> to vector<8x40xf32>
    %179 = vector.extract_strided_slice %161 {offsets = [0, 80], sizes = [8, 40], strides = [1, 1]} : vector<8x120xf32> to vector<8x40xf32>
    %180 = vector.broadcast %8 : vector<1x40xf32> to vector<8x40xf32>
    %181 = arith.addf %179, %180 : vector<8x40xf32>
    %182 = arith.mulf %169, %181 : vector<8x40xf32>
    %183 = arith.addf %178, %182 : vector<8x40xf32>
    %184 = math.tanh %183 : vector<8x40xf32>
    %cst_34 = arith.constant 1.000000e+00 : f32
    %185 = vector.broadcast %cst_34 : f32 to vector<8x40xf32>
    %186 = arith.subf %185, %177 : vector<8x40xf32>
    %187 = arith.mulf %186, %184 : vector<8x40xf32>
    %188 = arith.mulf %177, %159 : vector<8x40xf32>
    %189 = arith.addf %187, %188 : vector<8x40xf32>
    %190 = vector.extract_strided_slice %6 {offsets = [48, 0], sizes = [8, 120], strides = [1, 1]} : vector<64x120xf32> to vector<8x120xf32>
    %cst_35 = arith.constant dense<0.000000e+00> : vector<8x120xf32>
    %191 = tpu.matmul %189, %7, %cst_35 {dimension_numbers = #tpu.dot_dimension_numbers<[1], [0], [0], [1], [0, 0, 1, 1], [], []>} : vector<8x40xf32>, vector<40x120xf32>, vector<8x120xf32> -> vector<8x120xf32>
    %192 = vector.extract_strided_slice %190 {offsets = [0, 0], sizes = [8, 40], strides = [1, 1]} : vector<8x120xf32> to vector<8x40xf32>
    %193 = vector.extract_strided_slice %191 {offsets = [0, 0], sizes = [8, 40], strides = [1, 1]} : vector<8x120xf32> to vector<8x40xf32>
    %194 = arith.addf %192, %193 : vector<8x40xf32>
    %195 = arith.negf %194 : vector<8x40xf32>
    %196 = math.exp %195 : vector<8x40xf32>
    %cst_36 = arith.constant 1.000000e+00 : f32
    %197 = vector.broadcast %cst_36 : f32 to vector<8x40xf32>
    %198 = arith.addf %197, %196 : vector<8x40xf32>
    %199 = arith.divf %197, %198 : vector<8x40xf32>
    %200 = vector.extract_strided_slice %190 {offsets = [0, 40], sizes = [8, 40], strides = [1, 1]} : vector<8x120xf32> to vector<8x40xf32>
    %201 = vector.extract_strided_slice %191 {offsets = [0, 40], sizes = [8, 40], strides = [1, 1]} : vector<8x120xf32> to vector<8x40xf32>
    %202 = arith.addf %200, %201 : vector<8x40xf32>
    %203 = arith.negf %202 : vector<8x40xf32>
    %204 = math.exp %203 : vector<8x40xf32>
    %cst_37 = arith.constant 1.000000e+00 : f32
    %205 = vector.broadcast %cst_37 : f32 to vector<8x40xf32>
    %206 = arith.addf %205, %204 : vector<8x40xf32>
    %207 = arith.divf %205, %206 : vector<8x40xf32>
    %208 = vector.extract_strided_slice %190 {offsets = [0, 80], sizes = [8, 40], strides = [1, 1]} : vector<8x120xf32> to vector<8x40xf32>
    %209 = vector.extract_strided_slice %191 {offsets = [0, 80], sizes = [8, 40], strides = [1, 1]} : vector<8x120xf32> to vector<8x40xf32>
    %210 = vector.broadcast %8 : vector<1x40xf32> to vector<8x40xf32>
    %211 = arith.addf %209, %210 : vector<8x40xf32>
    %212 = arith.mulf %199, %211 : vector<8x40xf32>
    %213 = arith.addf %208, %212 : vector<8x40xf32>
    %214 = math.tanh %213 : vector<8x40xf32>
    %cst_38 = arith.constant 1.000000e+00 : f32
    %215 = vector.broadcast %cst_38 : f32 to vector<8x40xf32>
    %216 = arith.subf %215, %207 : vector<8x40xf32>
    %217 = arith.mulf %216, %214 : vector<8x40xf32>
    %218 = arith.mulf %207, %189 : vector<8x40xf32>
    %219 = arith.addf %217, %218 : vector<8x40xf32>
    %220 = vector.extract_strided_slice %6 {offsets = [56, 0], sizes = [8, 120], strides = [1, 1]} : vector<64x120xf32> to vector<8x120xf32>
    %cst_39 = arith.constant dense<0.000000e+00> : vector<8x120xf32>
    %221 = tpu.matmul %219, %7, %cst_39 {dimension_numbers = #tpu.dot_dimension_numbers<[1], [0], [0], [1], [0, 0, 1, 1], [], []>} : vector<8x40xf32>, vector<40x120xf32>, vector<8x120xf32> -> vector<8x120xf32>
    %222 = vector.extract_strided_slice %220 {offsets = [0, 0], sizes = [8, 40], strides = [1, 1]} : vector<8x120xf32> to vector<8x40xf32>
    %223 = vector.extract_strided_slice %221 {offsets = [0, 0], sizes = [8, 40], strides = [1, 1]} : vector<8x120xf32> to vector<8x40xf32>
    %224 = arith.addf %222, %223 : vector<8x40xf32>
    %225 = arith.negf %224 : vector<8x40xf32>
    %226 = math.exp %225 : vector<8x40xf32>
    %cst_40 = arith.constant 1.000000e+00 : f32
    %227 = vector.broadcast %cst_40 : f32 to vector<8x40xf32>
    %228 = arith.addf %227, %226 : vector<8x40xf32>
    %229 = arith.divf %227, %228 : vector<8x40xf32>
    %230 = vector.extract_strided_slice %220 {offsets = [0, 40], sizes = [8, 40], strides = [1, 1]} : vector<8x120xf32> to vector<8x40xf32>
    %231 = vector.extract_strided_slice %221 {offsets = [0, 40], sizes = [8, 40], strides = [1, 1]} : vector<8x120xf32> to vector<8x40xf32>
    %232 = arith.addf %230, %231 : vector<8x40xf32>
    %233 = arith.negf %232 : vector<8x40xf32>
    %234 = math.exp %233 : vector<8x40xf32>
    %cst_41 = arith.constant 1.000000e+00 : f32
    %235 = vector.broadcast %cst_41 : f32 to vector<8x40xf32>
    %236 = arith.addf %235, %234 : vector<8x40xf32>
    %237 = arith.divf %235, %236 : vector<8x40xf32>
    %238 = vector.extract_strided_slice %220 {offsets = [0, 80], sizes = [8, 40], strides = [1, 1]} : vector<8x120xf32> to vector<8x40xf32>
    %239 = vector.extract_strided_slice %221 {offsets = [0, 80], sizes = [8, 40], strides = [1, 1]} : vector<8x120xf32> to vector<8x40xf32>
    %240 = vector.broadcast %8 : vector<1x40xf32> to vector<8x40xf32>
    %241 = arith.addf %239, %240 : vector<8x40xf32>
    %242 = arith.mulf %229, %241 : vector<8x40xf32>
    %243 = arith.addf %238, %242 : vector<8x40xf32>
    %244 = math.tanh %243 : vector<8x40xf32>
    %cst_42 = arith.constant 1.000000e+00 : f32
    %245 = vector.broadcast %cst_42 : f32 to vector<8x40xf32>
    %246 = arith.subf %245, %237 : vector<8x40xf32>
    %247 = arith.mulf %246, %244 : vector<8x40xf32>
    %248 = arith.mulf %237, %219 : vector<8x40xf32>
    %249 = arith.addf %247, %248 : vector<8x40xf32>
    %c0_43 = arith.constant 0 : index
    %c0_44 = arith.constant 0 : index
    %c0_45 = arith.constant 0 : index
    %250 = vector.load %arg13[%c0_43, %c0_44, %c0_45] : memref<1x8x40xf32, #tpu.memory_space<vmem>>, vector<1x8x40xf32>
    %251 = vector.shape_cast %250 : vector<1x8x40xf32> to vector<8x40xf32>
    %252 = vector.shape_cast %249 : vector<8x40xf32> to vector<1x8x40xf32>
    tpu.vector_store %arg13[%c0_43, %c0_44, %c0_45], %252 {strides = array<i32>} : memref<1x8x40xf32, #tpu.memory_space<vmem>>, vector<1x8x40xf32>,
    %253 = tpu.concatenate %39, %69, %99, %129, %159, %189, %219, %249 in 0 : vector<8x40xf32>, vector<8x40xf32>, vector<8x40xf32>, vector<8x40xf32>, vector<8x40xf32>, vector<8x40xf32>, vector<8x40xf32>, vector<8x40xf32> -> vector<64x40xf32>
    %c0_46 = arith.constant 0 : index
    %c0_47 = arith.constant 0 : index
    %254 = vector.load %arg7[%c0_46, %c0_47] : memref<40x120xf32, #tpu.memory_space<vmem>>, vector<40x120xf32>
    %cst_48 = arith.constant dense<0.000000e+00> : vector<64x120xf32>
    %255 = tpu.matmul %253, %254, %cst_48 {dimension_numbers = #tpu.dot_dimension_numbers<[1], [0], [0], [1], [0, 0, 1, 1], [], []>} : vector<64x40xf32>, vector<40x120xf32>, vector<64x120xf32> -> vector<64x120xf32>
    %c0_49 = arith.constant 0 : index
    %c0_50 = arith.constant 0 : index
    %256 = vector.load %arg8[%c0_49, %c0_50] : memref<1x120xf32, #tpu.memory_space<vmem>>, vector<1x120xf32>
    %257 = vector.broadcast %256 : vector<1x120xf32> to vector<64x120xf32>
    %258 = arith.addf %255, %257 : vector<64x120xf32>
    %259 = vector.extract_strided_slice %258 {offsets = [0, 0], sizes = [64, 40], strides = [1, 1]} : vector<64x120xf32> to vector<64x40xf32>
    %260 = vector.extract_strided_slice %258 {offsets = [0, 40], sizes = [64, 40], strides = [1, 1]} : vector<64x120xf32> to vector<64x40xf32>
    %261 = vector.extract_strided_slice %258 {offsets = [0, 80], sizes = [64, 40], strides = [1, 1]} : vector<64x120xf32> to vector<64x40xf32>
    %cst_51 = arith.constant dense<0.000000e+00> : vector<64x64xf32>
    %262 = tpu.matmul %259, %260, %cst_51 {dimension_numbers = #tpu.dot_dimension_numbers<[1], [1], [0], [0], [0, 0, 1, 0], [], []>} : vector<64x40xf32>, vector<64x40xf32>, vector<64x64xf32> -> vector<64x64xf32>
    %cst_52 = arith.constant 0.158113882 : f32
    %263 = vector.broadcast %cst_52 : f32 to vector<64x64xf32>
    %264 = arith.mulf %262, %263 : vector<64x64xf32>
    %265 = tpu.iota {dimensions = array<i32: 0>} : vector<64x64xi32>
    %c8_i32 = arith.constant 8 : i32
    %c0_i32 = arith.constant 0 : i32
    %266 = arith.cmpi eq, %c8_i32, %c0_i32 : i32
    %c1_i32 = arith.constant 1 : i32
    %267 = arith.select %266, %c1_i32, %c8_i32 : i32
    %268 = vector.broadcast %267 : i32 to vector<64x64xi32>
    %269 = arith.remsi %265, %268 : vector<64x64xi32>
    %c0_i32_53 = arith.constant 0 : i32
    %270 = vector.broadcast %c0_i32_53 : i32 to vector<64x64xi32>
    %271 = arith.cmpi ne, %269, %270 : vector<64x64xi32>
    %c0_i32_54 = arith.constant 0 : i32
    %272 = vector.broadcast %c0_i32_54 : i32 to vector<64x64xi32>
    %273 = arith.cmpi slt, %269, %272 : vector<64x64xi32>
    %c0_i32_55 = arith.constant 0 : i32
    %274 = arith.cmpi slt, %267, %c0_i32_55 : i32
    %275 = vector.broadcast %274 : i1 to vector<64x64xi1>
    %276 = vector.broadcast %275 : vector<64x64xi1> to vector<64x64xi1>
    %277 = arith.xori %273, %276 : vector<64x64xi1>
    %278 = arith.andi %277, %271 : vector<64x64xi1>
    %279 = vector.broadcast %267 : i32 to vector<64x64xi32>
    %280 = arith.addi %269, %279 : vector<64x64xi32>
    %281 = arith.select %278, %280, %269 : vector<64x64xi1>, vector<64x64xi32>
    %282 = tpu.iota {dimensions = array<i32: 1>} : vector<64x64xi32>
    %c8_i32_56 = arith.constant 8 : i32
    %c0_i32_57 = arith.constant 0 : i32
    %283 = arith.cmpi eq, %c8_i32_56, %c0_i32_57 : i32
    %c1_i32_58 = arith.constant 1 : i32
    %284 = arith.select %283, %c1_i32_58, %c8_i32_56 : i32
    %285 = vector.broadcast %284 : i32 to vector<64x64xi32>
    %286 = arith.remsi %282, %285 : vector<64x64xi32>
    %c0_i32_59 = arith.constant 0 : i32
    %287 = vector.broadcast %c0_i32_59 : i32 to vector<64x64xi32>
    %288 = arith.cmpi ne, %286, %287 : vector<64x64xi32>
    %c0_i32_60 = arith.constant 0 : i32
    %289 = vector.broadcast %c0_i32_60 : i32 to vector<64x64xi32>
    %290 = arith.cmpi slt, %286, %289 : vector<64x64xi32>
    %c0_i32_61 = arith.constant 0 : i32
    %291 = arith.cmpi slt, %284, %c0_i32_61 : i32
    %292 = vector.broadcast %291 : i1 to vector<64x64xi1>
    %293 = vector.broadcast %292 : vector<64x64xi1> to vector<64x64xi1>
    %294 = arith.xori %290, %293 : vector<64x64xi1>
    %295 = arith.andi %294, %288 : vector<64x64xi1>
    %296 = vector.broadcast %284 : i32 to vector<64x64xi32>
    %297 = arith.addi %286, %296 : vector<64x64xi32>
    %298 = arith.select %295, %297, %286 : vector<64x64xi1>, vector<64x64xi32>
    %299 = arith.cmpi eq, %281, %298 : vector<64x64xi32>
    %cst_62 = arith.constant -1.000000e+30 : f32
    %300 = vector.broadcast %cst_62 : f32 to vector<64x64xf32>
    %301 = arith.select %299, %264, %300 : vector<64x64xi1>, vector<64x64xf32>
    %cst_63 = arith.constant dense<0xFF800000> : vector<64xf32>
    %302 = vector.multi_reduction <maximumf>, %301, %cst_63 [1] : vector<64x64xf32> to vector<64xf32>
    %303 = vector.shape_cast %302 : vector<64xf32> to vector<64x1xf32>
    %304 = vector.broadcast %303 : vector<64x1xf32> to vector<64x64xf32>
    %305 = arith.subf %301, %304 : vector<64x64xf32>
    %306 = math.exp %305 : vector<64x64xf32>
    %cst_64 = arith.constant dense<0.000000e+00> : vector<64xf32>
    %307 = vector.multi_reduction <add>, %306, %cst_64 [1] : vector<64x64xf32> to vector<64xf32>
    %308 = vector.shape_cast %307 : vector<64xf32> to vector<64x1xf32>
    %309 = tpu.reciprocal %308 {approx = true} : vector<64x1xf32> -> vector<64x1xf32>
    %310 = vector.broadcast %309 : vector<64x1xf32> to vector<64x64xf32>
    %311 = arith.mulf %306, %310 : vector<64x64xf32>
    %312 = tpu.iota {dimensions = array<i32: 1>} : vector<8x64xi32>
    %c8_i32_65 = arith.constant 8 : i32
    %c0_i32_66 = arith.constant 0 : i32
    %313 = arith.cmpi eq, %c8_i32_65, %c0_i32_66 : i32
    %c1_i32_67 = arith.constant 1 : i32
    %314 = arith.select %313, %c1_i32_67, %c8_i32_65 : i32
    %315 = vector.broadcast %314 : i32 to vector<8x64xi32>
    %316 = arith.remsi %312, %315 : vector<8x64xi32>
    %c0_i32_68 = arith.constant 0 : i32
    %317 = vector.broadcast %c0_i32_68 : i32 to vector<8x64xi32>
    %318 = arith.cmpi ne, %316, %317 : vector<8x64xi32>
    %c0_i32_69 = arith.constant 0 : i32
    %319 = vector.broadcast %c0_i32_69 : i32 to vector<8x64xi32>
    %320 = arith.cmpi slt, %316, %319 : vector<8x64xi32>
    %c0_i32_70 = arith.constant 0 : i32
    %321 = arith.cmpi slt, %314, %c0_i32_70 : i32
    %322 = vector.broadcast %321 : i1 to vector<8x64xi1>
    %323 = vector.broadcast %322 : vector<8x64xi1> to vector<8x64xi1>
    %324 = arith.xori %320, %323 : vector<8x64xi1>
    %325 = arith.andi %324, %318 : vector<8x64xi1>
    %326 = vector.broadcast %314 : i32 to vector<8x64xi32>
    %327 = arith.addi %316, %326 : vector<8x64xi32>
    %328 = arith.select %325, %327, %316 : vector<8x64xi1>, vector<8x64xi32>
    %329 = tpu.iota {dimensions = array<i32: 0>} : vector<8x64xi32>
    %330 = arith.cmpi eq, %328, %329 : vector<8x64xi32>
    %331 = arith.extui %330 : vector<8x64xi1> to vector<8x64xi32>
    %332 = arith.sitofp %331 : vector<8x64xi32> to vector<8x64xf32>
    %cst_71 = arith.constant dense<0.000000e+00> : vector<8x64xf32>
    %333 = tpu.matmul %332, %311, %cst_71 {dimension_numbers = #tpu.dot_dimension_numbers<[1], [0], [0], [1], [0, 0, 1, 1], [], []>} : vector<8x64xf32>, vector<64x64xf32>, vector<8x64xf32> -> vector<8x64xf32>
    %cst_72 = arith.constant dense<0.000000e+00> : vector<8x40xf32>
    %334 = tpu.matmul %333, %261, %cst_72 {dimension_numbers = #tpu.dot_dimension_numbers<[1], [0], [0], [1], [0, 0, 1, 1], [], []>} : vector<8x64xf32>, vector<64x40xf32>, vector<8x40xf32> -> vector<8x40xf32>
    %c0_73 = arith.constant 0 : index
    %c0_74 = arith.constant 0 : index
    %335 = vector.load %arg9[%c0_73, %c0_74] : memref<40x50xf32, #tpu.memory_space<vmem>>, vector<40x50xf32>
    %cst_75 = arith.constant dense<0.000000e+00> : vector<8x50xf32>
    %336 = tpu.matmul %334, %335, %cst_75 {dimension_numbers = #tpu.dot_dimension_numbers<[1], [0], [0], [1], [0, 0, 1, 1], [], []>} : vector<8x40xf32>, vector<40x50xf32>, vector<8x50xf32> -> vector<8x50xf32>
    %c0_76 = arith.constant 0 : index
    %c0_77 = arith.constant 0 : index
    %337 = vector.load %arg2[%c0_76, %c0_77] : memref<8x3xf32, #tpu.memory_space<vmem>>, vector<8x3xf32>
    %c0_78 = arith.constant 0 : index
    %c0_79 = arith.constant 0 : index
    %338 = vector.load %arg10[%c0_78, %c0_79] : memref<3x50xf32, #tpu.memory_space<vmem>>, vector<3x50xf32>
    %cst_80 = arith.constant dense<0.000000e+00> : vector<8x50xf32>
    %339 = tpu.matmul %337, %338, %cst_80 {dimension_numbers = #tpu.dot_dimension_numbers<[1], [0], [0], [1], [0, 0, 1, 1], [], []>} : vector<8x3xf32>, vector<3x50xf32>, vector<8x50xf32> -> vector<8x50xf32>
    %340 = arith.addf %336, %339 : vector<8x50xf32>
    %c0_81 = arith.constant 0 : index
    %c0_82 = arith.constant 0 : index
    %341 = vector.load %arg11[%c0_81, %c0_82] : memref<1x50xf32, #tpu.memory_space<vmem>>, vector<1x50xf32>
    %342 = vector.broadcast %341 : vector<1x50xf32> to vector<8x50xf32>
    %343 = arith.addf %340, %342 : vector<8x50xf32>
    %344 = math.tanh %343 : vector<8x50xf32>
    %c0_83 = arith.constant 0 : index
    %c0_84 = arith.constant 0 : index
    %345 = vector.load %arg12[%c0_83, %c0_84] : memref<8x50xf32, #tpu.memory_space<vmem>>, vector<8x50xf32>
    tpu.vector_store %arg12[%c0_83, %c0_84], %344 {strides = array<i32>} : memref<8x50xf32, #tpu.memory_space<vmem>>, vector<8x50xf32>,
    return
  }
  func.func @transform_0(%arg0: i32) -> (i32, i32, i32) {
    %c0_i32 = arith.constant 0 : i32
    %c0_i32_0 = arith.constant 0 : i32
    %c0_i32_1 = arith.constant 0 : i32
    %c0_i32_2 = arith.constant 0 : i32
    return %c0_i32, %c0_i32_0, %c0_i32_1 : i32, i32, i32
  }
  func.func @transform_1(%arg0: i32) -> (i32, i32) {
    %c0_i32 = arith.constant 0 : i32
    %c0_i32_0 = arith.constant 0 : i32
    %c0_i32_1 = arith.constant 0 : i32
    return %c0_i32, %c0_i32_0 : i32, i32
  }
  func.func @transform_2(%arg0: i32) -> (i32, i32) {
    %c0_i32 = arith.constant 0 : i32
    %c0_i32_0 = arith.constant 0 : i32
    %c0_i32_1 = arith.constant 0 : i32
    return %c0_i32, %c0_i32_0 : i32, i32
  }
  func.func @transform_3(%arg0: i32) -> (i32, i32) {
    %c0_i32 = arith.constant 0 : i32
    %c0_i32_0 = arith.constant 0 : i32
    %c0_i32_1 = arith.constant 0 : i32
    return %c0_i32, %c0_i32_0 : i32, i32
  }
  func.func @transform_4(%arg0: i32) -> (i32, i32) {
    %c0_i32 = arith.constant 0 : i32
    %c0_i32_0 = arith.constant 0 : i32
    %c0_i32_1 = arith.constant 0 : i32
    return %c0_i32, %c0_i32_0 : i32, i32
  }
  func.func @transform_5(%arg0: i32) -> (i32, i32) {
    %c0_i32 = arith.constant 0 : i32
    %c0_i32_0 = arith.constant 0 : i32
    %c0_i32_1 = arith.constant 0 : i32
    return %c0_i32, %c0_i32_0 : i32, i32
  }
  func.func @transform_6(%arg0: i32) -> (i32, i32) {
    %c0_i32 = arith.constant 0 : i32
    %c0_i32_0 = arith.constant 0 : i32
    %c0_i32_1 = arith.constant 0 : i32
    return %c0_i32, %c0_i32_0 : i32, i32
  }
  func.func @transform_7(%arg0: i32) -> (i32, i32) {
    %c0_i32 = arith.constant 0 : i32
    %c0_i32_0 = arith.constant 0 : i32
    %c0_i32_1 = arith.constant 0 : i32
    return %c0_i32, %c0_i32_0 : i32, i32
  }
  func.func @transform_8(%arg0: i32) -> (i32, i32) {
    %c0_i32 = arith.constant 0 : i32
    %c0_i32_0 = arith.constant 0 : i32
    %c0_i32_1 = arith.constant 0 : i32
    return %c0_i32, %c0_i32_0 : i32, i32
  }
  func.func @transform_9(%arg0: i32) -> (i32, i32) {
    %c0_i32 = arith.constant 0 : i32
    %c0_i32_0 = arith.constant 0 : i32
    %c0_i32_1 = arith.constant 0 : i32
    return %c0_i32, %c0_i32_0 : i32, i32
  }
  func.func @transform_10(%arg0: i32) -> (i32, i32) {
    %c0_i32 = arith.constant 0 : i32
    %c0_i32_0 = arith.constant 0 : i32
    %c0_i32_1 = arith.constant 0 : i32
    return %c0_i32, %c0_i32_0 : i32, i32
  }
  func.func @transform_11(%arg0: i32) -> (i32, i32) {
    %c0_i32 = arith.constant 0 : i32
    %c0_i32_0 = arith.constant 0 : i32
    %c0_i32_1 = arith.constant 0 : i32
    return %c0_i32, %c0_i32_0 : i32, i32
  }
  func.func @transform_12(%arg0: i32) -> (i32, i32, i32) {
    %c0_i32 = arith.constant 0 : i32
    %c0_i32_0 = arith.constant 0 : i32
    %c0_i32_1 = arith.constant 0 : i32
    %c0_i32_2 = arith.constant 0 : i32
    return %c0_i32, %c0_i32_0, %c0_i32_1 : i32, i32, i32
  }
}

</mosaic_0001>

<llo_original>
// kernel: tpu_custom_call.1
$region0: #{tpu_custom_call.1}
  #allocation0 [shape = 'u32[]', space=smem, size = 0x4, offset = 0x4, fixed_abs, tag = 'smem constant byte address 0x4 - core index']
  #allocation1 [shape = 'u32[144,128]{1,0:T(1,128)}', space=vmem, size = 0x12000, scoped, tag = 'internal scratch']
  %s0 = inlined_call_operand.vmem [shape: f32[8,8,5], index: 0, kind: input, shape index: {}]
  %s1 = inlined_call_operand.vmem [shape: f32[8,3], index: 1, kind: input, shape index: {}]
  %s2 = inlined_call_operand.hbm [shape: f32[5,120], index: 2, kind: input, shape index: {}]
  %s3 = inlined_call_operand.vmem [shape: f32[40,120], index: 3, kind: input, shape index: {}]
  %s4 = inlined_call_operand.vmem [shape: f32[1,120], index: 4, kind: input, shape index: {}]
  %s5 = inlined_call_operand.vmem [shape: f32[1,40], index: 5, kind: input, shape index: {}]
  %s6 = inlined_call_operand.vmem [shape: f32[40,120], index: 6, kind: input, shape index: {}]
  %s7 = inlined_call_operand.vmem [shape: f32[1,120], index: 7, kind: input, shape index: {}]
  %s8 = inlined_call_operand.vmem [shape: f32[40,50], index: 8, kind: input, shape index: {}]
  %s9 = inlined_call_operand.vmem [shape: f32[3,50], index: 9, kind: input, shape index: {}]
  %s10 = inlined_call_operand.vmem [shape: f32[1,50], index: 10, kind: input, shape index: {}]
  %s11 = inlined_call_operand.hbm [shape: f32[8,50], index: 11, kind: output, shape index: {0}]
  %s12 = inlined_call_operand.hbm [shape: f32[1,8,40], index: 12, kind: output, shape index: {1}]
  %13 = xla_tuple %s11, %s12
  %s14 = sld [smem:[#allocation0]]
  $region66: #{tpu_custom_call.1} parent=0
    _
  %s16 = ssub.s32 1, %s14
  %s17 = scalar_select 0, %s16, %s14
  $region1: #{tpu_custom_call.1} parent=0
    #allocation2 [shape = 'u8[4096]{0}', space=vmem, size = 0x1000, scoped, tag = 'input window, operand 2, single buffered']
    #allocation3 [shape = 's32[1]{0}', space=sflag, size = 0x4, scoped, tag = 'scoped memory for tpu_custom_call.1']
    #allocation4 [shape = 's32[1]{0}', space=sflag, size = 0x4, scoped, tag = 'scoped memory for tpu_custom_call.1']
    #allocation5 [shape = 'u8[4096]{0}', space=vmem, size = 0x1000, scoped, tag = 'output window, operand 0, single buffered']
    #allocation6 [shape = 'u8[4096]{0}', space=vmem, size = 0x1000, scoped, tag = 'output window, operand 1, single buffered']
    #allocation7 [shape = 's32[1]{0}', space=sflag, size = 0x4, scoped, tag = 'scoped memory for tpu_custom_call.1']
    %18 = vsyncpa [#allocation3], 0
    %19 = vsyncpa [#allocation4], 0
    %20 = vsyncpa [#allocation7], 0
    // Predicated region
    $region2: #{tpu_custom_call.1} parent=1 // pred_check
      _
    $region3: #{tpu_custom_call.1} parent=1 // pred_check_branch
      %22 = sbr.rel (0) target = $region5
    $region4: #{tpu_custom_call.1} parent=1 // pred_region
      _
    $region5: #{tpu_custom_call.1} parent=1 // pred_fallthru
      _
    // Predicated region
    $region6: #{tpu_custom_call.1} parent=1 // pred_check
      _
    $region7: #{tpu_custom_call.1} parent=1 // pred_check_branch
      %24 = sbr.rel (0) target = $region9
    $region8: #{tpu_custom_call.1} parent=1 // pred_region
      _
    $region9: #{tpu_custom_call.1} parent=1 // pred_fallthru
      _
    // Predicated region
    $region10: #{tpu_custom_call.1} parent=1 // pred_check
      _
    $region11: #{tpu_custom_call.1} parent=1 // pred_check_branch
      %26 = sbr.rel (0) target = $region13
    $region12: #{tpu_custom_call.1} parent=1 // pred_region
      %s28 = ssub.s32 128, 128
      %29 = vsyncadd [#allocation3], %s28
      %s31 = sshll.u32 [#allocation2], 4
      %s32 = int_to_ptr.vmem [resolvable:$true] %s31
      %34 = dma.hbm_to_vmem [thread:$0]  %s2, 128, %s32, [#allocation3]
    $region13: #{tpu_custom_call.1} parent=1 // pred_fallthru
      _
    // Predicated region
    $region14: #{tpu_custom_call.1} parent=1 // pred_check
      _
    $region15: #{tpu_custom_call.1} parent=1 // pred_check_branch
      %36 = sbr.rel (0) target = $region17
    $region16: #{tpu_custom_call.1} parent=1 // pred_region
      _
    $region17: #{tpu_custom_call.1} parent=1 // pred_fallthru
      _
    // Predicated region
    $region18: #{tpu_custom_call.1} parent=1 // pred_check
      _
    $region19: #{tpu_custom_call.1} parent=1 // pred_check_branch
      %38 = sbr.rel (0) target = $region21
    $region20: #{tpu_custom_call.1} parent=1 // pred_region
      _
    $region21: #{tpu_custom_call.1} parent=1 // pred_fallthru
      _
    // Predicated region
    $region22: #{tpu_custom_call.1} parent=1 // pred_check
      _
    $region23: #{tpu_custom_call.1} parent=1 // pred_check_branch
      %40 = sbr.rel (0) target = $region25
    $region24: #{tpu_custom_call.1} parent=1 // pred_region
      _
    $region25: #{tpu_custom_call.1} parent=1 // pred_fallthru
      _
    // Predicated region
    $region26: #{tpu_custom_call.1} parent=1 // pred_check
      _
    $region27: #{tpu_custom_call.1} parent=1 // pred_check_branch
      %42 = sbr.rel (0) target = $region29
    $region28: #{tpu_custom_call.1} parent=1 // pred_region
      _
    $region29: #{tpu_custom_call.1} parent=1 // pred_fallthru
      _
    // Predicated region
    $region30: #{tpu_custom_call.1} parent=1 // pred_check
      _
    $region31: #{tpu_custom_call.1} parent=1 // pred_check_branch
      %44 = sbr.rel (0) target = $region33
    $region32: #{tpu_custom_call.1} parent=1 // pred_region
      _
    $region33: #{tpu_custom_call.1} parent=1 // pred_fallthru
      _
    // Predicated region
    $region34: #{tpu_custom_call.1} parent=1 // pred_check
      _
    $region35: #{tpu_custom_call.1} parent=1 // pred_check_branch
      %46 = sbr.rel (0) target = $region37
    $region36: #{tpu_custom_call.1} parent=1 // pred_region
      _
    $region37: #{tpu_custom_call.1} parent=1 // pred_fallthru
      _
    // Predicated region
    $region38: #{tpu_custom_call.1} parent=1 // pred_check
      _
    $region39: #{tpu_custom_call.1} parent=1 // pred_check_branch
      %48 = sbr.rel (0) target = $region41
    $region40: #{tpu_custom_call.1} parent=1 // pred_region
      _
    $region41: #{tpu_custom_call.1} parent=1 // pred_fallthru
      _
    // Predicated region
    $region42: #{tpu_custom_call.1} parent=1 // pred_check
      _
    $region43: #{tpu_custom_call.1} parent=1 // pred_check_branch
      %50 = sbr.rel (0) target = $region45
    $region44: #{tpu_custom_call.1} parent=1 // pred_region
      _
    $region45: #{tpu_custom_call.1} parent=1 // pred_fallthru
      _
    // Predicated region
    $region46: #{tpu_custom_call.1} parent=1 // pred_check
      _
    $region47: #{tpu_custom_call.1} parent=1 // pred_check_branch
      %52 = sbr.rel (0) target = $region49
    $region48: #{tpu_custom_call.1} parent=1 // pred_region
      %53 = dma.done [#allocation3], 128
    $region49: #{tpu_custom_call.1} parent=1 // pred_fallthru
      _
    %v54 = vld [vmem:[%s0] sm:$0xff]
    %v55 = vld [vmem:[%s0 + $0x8] sm:$0xff]
    %v56 = vld [vmem:[%s0 + $0x10] sm:$0xff]
    %v57 = vld [vmem:[%s0 + $0x18] sm:$0xff]
    %v58 = vld [vmem:[%s0 + $0x20] sm:$0xff]
    %v59 = vld [vmem:[%s0 + $0x28] sm:$0xff]
    %v60 = vld [vmem:[%s0 + $0x30] sm:$0xff]
    %v61 = vld [vmem:[%s0 + $0x38] sm:$0xff]
    %v62 = vld [vmem:[#allocation2] sm:$0x1f]
    %v63 = vld [vmem:[%s4] sm:$0x1]
    %v65 = vlaneseq
    %v66 = vshrl.u32 %v65, 7
    %v67 = vsub.s32 0, %v66
    %v68 = vrot.slane %v63, %v67
    %vm70 = vcmask 39936
    %v72 = vsel %vm70, %v54, 0
    %v75 = vsel %vm70, %v55, 0
    %v78 = vsel %vm70, %v56, 0
    %v81 = vsel %vm70, %v57, 0
    %v84 = vsel %vm70, %v58, 0
    %v87 = vsel %vm70, %v59, 0
    %v90 = vsel %vm70, %v60, 0
    %v93 = vsel %vm70, %v61, 0
    %vm95 = vcmask 1044480
    %v97 = vsel %vm95, %v62, 0
    %99 = vmatprep.subr.mxu0 0.0
    %100 = vmatpush1.msra.mxu0 %v97
    %101 = vmatprep.subr.mxu0 0.0
    %102 = vmatpush1.msra.mxu0 0.0
    %103 = vmatprep.subr.mxu0 0.0
    %104 = vmatpush1.msra.mxu0 0.0
    %105 = vmatprep.subr.mxu0 0.0
    %106 = vmatpush1.msra.mxu0 0.0
    %107 = vmatprep.subr.mxu0 0.0
    %108 = vmatpush1.msra.mxu0 0.0
    %109 = vmatprep.subr.mxu0 0.0
    %110 = vmatpush1.msra.mxu0 0.0
    %111 = vmatprep.subr.mxu0 0.0
    %112 = vmatpush1.msra.mxu0 0.0
    %113 = vmatprep.subr.mxu0 0.0
    %114 = vmatpush1.msra.mxu0 0.0
    %115 = vmatprep.subr.mxu0 0.0
    %116 = vmatpush1.msra.mxu0 0.0
    %117 = vmatprep.subr.mxu0 0.0
    %118 = vmatpush1.msra.mxu0 0.0
    %119 = vmatprep.subr.mxu0 0.0
    %120 = vmatpush1.msra.mxu0 0.0
    %121 = vmatprep.subr.mxu0 0.0
    %122 = vmatpush1.msra.mxu0 0.0
    %123 = vmatprep.subr.mxu0 0.0
    %124 = vmatpush1.msra.mxu0 0.0
    %125 = vmatprep.subr.mxu0 0.0
    %126 = vmatpush1.msra.mxu0 0.0
    %127 = vmatprep.subr.mxu0 0.0
    %128 = vmatpush1.msra.mxu0 0.0
    %129 = vmatprep.subr.mxu0 0.0
    %130 = vmatpush1.msra.mxu0 0.0
    %131 = vmatprep.subr.mxu0 0.0
    %132 = vmatpush1.msra.mxu0 0.0
    %133 = vmatprep.subr.mxu0 0.0
    %134 = vmatpush1.msra.mxu0 0.0
    %135 = vmatprep.subr.mxu0 0.0
    %136 = vmatpush1.msra.mxu0 0.0
    %137 = vmatprep.subr.mxu0 0.0
    %138 = vmatpush1.msra.mxu0 0.0
    %139 = vmatprep.subr.mxu0 0.0
    %140 = vmatpush1.msra.mxu0 0.0
    %141 = vmatprep.subr.mxu0 0.0
    %142 = vmatpush1.msra.mxu0 0.0
    %143 = vmatprep.subr.mxu0 0.0
    %144 = vmatpush1.msra.mxu0 0.0
    %145 = vmatprep.subr.mxu0 0.0
    %146 = vmatpush1.msra.mxu0 0.0
    %147 = vmatprep.subr.mxu0 0.0
    %148 = vmatpush1.msra.mxu0 0.0
    %149 = vmatprep.subr.mxu0 0.0
    %150 = vmatpush1.msra.mxu0 0.0
    %151 = vmatprep.subr.mxu0 0.0
    %152 = vmatpush1.msra.mxu0 0.0
    %153 = vmatprep.subr.mxu0 0.0
    %154 = vmatpush1.msra.mxu0 0.0
    %155 = vmatprep.subr.mxu0 0.0
    %156 = vmatpush1.msra.mxu0 0.0
    %157 = vmatprep.subr.mxu0 0.0
    %158 = vmatpush1.msra.mxu0 0.0
    %159 = vmatprep.subr.mxu0 0.0
    %160 = vmatpush1.msra.mxu0 0.0
    %161 = vmatprep.subr.mxu0 0.0
    %162 = vmatpush1.msra.mxu0 0.0
    %163 = vmatprep.mubr.f32.mxu0 0.0
    %164 = vmatmul.mubr.f32.gmra.mrb[0].mxu0 %v72
    %v165 = vpop.f32.mrb[0].mxu0
    %v166 = vadd.f32 %v68, %v165
    %v167 = vpop.f32.mrb[0].mxu0
    %168 = vmatprep.mubr.f32.mxu0 0.0
    %169 = vmatmul.mubr.f32.gmra.mrb[0].mxu0 %v75
    %v170 = vpop.f32.mrb[0].mxu0
    %v171 = vadd.f32 %v68, %v170
    %v172 = vpop.f32.mrb[0].mxu0
    %173 = vmatprep.mubr.f32.mxu0 0.0
    %174 = vmatmul.mubr.f32.gmra.mrb[0].mxu0 %v78
    %v175 = vpop.f32.mrb[0].mxu0
    %v176 = vadd.f32 %v68, %v175
    %v177 = vpop.f32.mrb[0].mxu0
    %178 = vmatprep.mubr.f32.mxu0 0.0
    %179 = vmatmul.mubr.f32.gmra.mrb[0].mxu0 %v81
    %v180 = vpop.f32.mrb[0].mxu0
    %v181 = vadd.f32 %v68, %v180
    %v182 = vpop.f32.mrb[0].mxu0
    %183 = vmatprep.mubr.f32.mxu0 0.0
    %184 = vmatmul.mubr.f32.gmra.mrb[0].mxu0 %v84
    %v185 = vpop.f32.mrb[0].mxu0
    %v186 = vadd.f32 %v68, %v185
    %v187 = vpop.f32.mrb[0].mxu0
    %188 = vmatprep.mubr.f32.mxu0 0.0
    %189 = vmatmul.mubr.f32.gmra.mrb[0].mxu0 %v87
    %v190 = vpop.f32.mrb[0].mxu0
    %v191 = vadd.f32 %v68, %v190
    %v192 = vpop.f32.mrb[0].mxu0
    %193 = vmatprep.mubr.f32.mxu0 0.0
    %194 = vmatmul.mubr.f32.gmra.mrb[0].mxu0 %v90
    %v195 = vpop.f32.mrb[0].mxu0
    %v196 = vadd.f32 %v68, %v195
    %v197 = vpop.f32.mrb[0].mxu0
    %198 = vmatprep.mubr.f32.mxu0 0.0
    %199 = vmatmul.mubr.f32.gmra.mrb[0].mxu0 %v93
    %v200 = vpop.f32.mrb[0].mxu0
    %v201 = vadd.f32 %v68, %v200
    %v202 = vpop.f32.mrb[0].mxu0
    %203 = vdwg.mxu0
    %v204 = vld [vmem:[%s3] sm:$0xff]
    %v205 = vld [vmem:[%s3 + $0x8] sm:$0xff]
    %v206 = vld [vmem:[%s3 + $0x10] sm:$0xff]
    %v207 = vld [vmem:[%s3 + $0x18] sm:$0xff]
    %v208 = vld [vmem:[%s3 + $0x20] sm:$0xff]
    %v209 = vld [vmem:[%s5] sm:$0x1]
    %vm210 = vcmask 326656
    %v212 = vsel %vm210, 0.0, 0
    %214 = vmatprep.subr.mxu0 0.0
    %215 = vmatpush1.msra.mxu0 %v204
    %216 = vmatprep.subr.mxu0 0.0
    %217 = vmatpush1.msra.mxu0 %v205
    %218 = vmatprep.subr.mxu0 0.0
    %219 = vmatpush1.msra.mxu0 %v206
    %220 = vmatprep.subr.mxu0 0.0
    %221 = vmatpush1.msra.mxu0 %v207
    %222 = vmatprep.subr.mxu0 0.0
    %223 = vmatpush1.msra.mxu0 %v208
    %224 = vmatprep.subr.mxu0 0.0
    %225 = vmatpush1.msra.mxu0 0.0
    %226 = vmatprep.subr.mxu0 0.0
    %227 = vmatpush1.msra.mxu0 0.0
    %228 = vmatprep.subr.mxu0 0.0
    %229 = vmatpush1.msra.mxu0 0.0
    %230 = vmatprep.subr.mxu0 0.0
    %231 = vmatpush1.msra.mxu0 0.0
    %232 = vmatprep.subr.mxu0 0.0
    %233 = vmatpush1.msra.mxu0 0.0
    %234 = vmatprep.subr.mxu0 0.0
    %235 = vmatpush1.msra.mxu0 0.0
    %236 = vmatprep.subr.mxu0 0.0
    %237 = vmatpush1.msra.mxu0 0.0
    %238 = vmatprep.subr.mxu0 0.0
    %239 = vmatpush1.msra.mxu0 0.0
    %240 = vmatprep.subr.mxu0 0.0
    %241 = vmatpush1.msra.mxu0 0.0
    %242 = vmatprep.subr.mxu0 0.0
    %243 = vmatpush1.msra.mxu0 0.0
    %244 = vmatprep.subr.mxu0 0.0
    %245 = vmatpush1.msra.mxu0 0.0
    %246 = vmatprep.subr.mxu0 0.0
    %247 = vmatpush1.msra.mxu0 0.0
    %248 = vmatprep.subr.mxu0 0.0
    %249 = vmatpush1.msra.mxu0 0.0
    %250 = vmatprep.subr.mxu0 0.0
    %251 = vmatpush1.msra.mxu0 0.0
    %252 = vmatprep.subr.mxu0 0.0
    %253 = vmatpush1.msra.mxu0 0.0
    %254 = vmatprep.subr.mxu0 0.0
    %255 = vmatpush1.msra.mxu0 0.0
    %256 = vmatprep.subr.mxu0 0.0
    %257 = vmatpush1.msra.mxu0 0.0
    %258 = vmatprep.subr.mxu0 0.0
    %259 = vmatpush1.msra.mxu0 0.0
    %260 = vmatprep.subr.mxu0 0.0
    %261 = vmatpush1.msra.mxu0 0.0
    %262 = vmatprep.subr.mxu0 0.0
    %263 = vmatpush1.msra.mxu0 0.0
    %264 = vmatprep.subr.mxu0 0.0
    %265 = vmatpush1.msra.mxu0 0.0
    %266 = vmatprep.subr.mxu0 0.0
    %267 = vmatpush1.msra.mxu0 0.0
    %268 = vmatprep.subr.mxu0 0.0
    %269 = vmatpush1.msra.mxu0 0.0
    %270 = vmatprep.subr.mxu0 0.0
    %271 = vmatpush1.msra.mxu0 0.0
    %272 = vmatprep.subr.mxu0 0.0
    %273 = vmatpush1.msra.mxu0 0.0
    %274 = vmatprep.subr.mxu0 0.0
    %275 = vmatpush1.msra.mxu0 0.0
    %276 = vmatprep.subr.mxu0 0.0
    %277 = vmatpush1.msra.mxu0 0.0
    %278 = vmatprep.mubr.f32.mxu0 0.0
    %279 = vmatmul.mubr.f32.gmra.mrb[0].mxu0 %v212
    %v280 = vpop.f32.mrb[0].mxu0
    %v281 = vadd.f32 0.0, %v280
    %v282 = vpop.f32.mrb[0].mxu0
    %283 = vdwg.mxu0
    %v284 = vadd.f32 %v166, %v281
    %v285 = vxor.u32 %v284, 2147483648
    %v286 = vmul.f32 %v285, 1.442695
    %v287 = vpow.pop %v286
    %v288 = vadd.f32 %v287, 1.0
    %v289 = vrcp.pop %v288
    %v290 = vmul.f32 1.0, %v289
    %v292 = vlaneseq
    %v293 = vshrl.u32 %v292, 7
    %v294 = vsub.s32 0, %v293
    %v295 = vrot.slane %v209, %v294
    %296 = vrot.lane.b32.xlu0 %v295, 80
    %v297 = vpop.permute.xlu0 %296
    %v299 = vadd.f32 %v281, %v297
    %301 = vrot.lane.b32.xlu0 %v299, 48
    %v302 = vpop.permute.xlu0 %301
    %v304 = vmul.f32 %v290, %v302
    %306 = vrot.lane.b32.xlu0 %v304, 80
    %v307 = vpop.permute.xlu0 %306
    %v309 = vadd.f32 %v166, %v307
    %v310 = vtanh.pop %v309
    %v311 = vsub.f32 1.0, %v290
    %313 = vrot.lane.b32.xlu0 %v310, 88
    %v314 = vpop.permute.xlu0 %313
    %v316 = vmul.f32 %v311, %v314
    %v317 = vmul.f32 %v290, 0.0
    %v318 = vadd.f32 %v316, %v317
    %320 = vrot.lane.b32.xlu0 %v318, 88
    %v321 = vpop.permute.xlu0 %320
    %v322 = vsel %vm210, %v321, 0
    %324 = vmatprep.subr.mxu0 0.0
    %325 = vmatpush1.msra.mxu0 %v204
    %326 = vmatprep.subr.mxu0 0.0
    %327 = vmatpush1.msra.mxu0 %v205
    %328 = vmatprep.subr.mxu0 0.0
    %329 = vmatpush1.msra.mxu0 %v206
    %330 = vmatprep.subr.mxu0 0.0
    %331 = vmatpush1.msra.mxu0 %v207
    %332 = vmatprep.subr.mxu0 0.0
    %333 = vmatpush1.msra.mxu0 %v208
    %334 = vmatprep.subr.mxu0 0.0
    %335 = vmatpush1.msra.mxu0 0.0
    %336 = vmatprep.subr.mxu0 0.0
    %337 = vmatpush1.msra.mxu0 0.0
    %338 = vmatprep.subr.mxu0 0.0
    %339 = vmatpush1.msra.mxu0 0.0
    %340 = vmatprep.subr.mxu0 0.0
    %341 = vmatpush1.msra.mxu0 0.0
    %342 = vmatprep.subr.mxu0 0.0
    %343 = vmatpush1.msra.mxu0 0.0
    %344 = vmatprep.subr.mxu0 0.0
    %345 = vmatpush1.msra.mxu0 0.0
    %346 = vmatprep.subr.mxu0 0.0
    %347 = vmatpush1.msra.mxu0 0.0
    %348 = vmatprep.subr.mxu0 0.0
    %349 = vmatpush1.msra.mxu0 0.0
    %350 = vmatprep.subr.mxu0 0.0
    %351 = vmatpush1.msra.mxu0 0.0
    %352 = vmatprep.subr.mxu0 0.0
    %353 = vmatpush1.msra.mxu0 0.0
    %354 = vmatprep.subr.mxu0 0.0
    %355 = vmatpush1.msra.mxu0 0.0
    %356 = vmatprep.subr.mxu0 0.0
    %357 = vmatpush1.msra.mxu0 0.0
    %358 = vmatprep.subr.mxu0 0.0
    %359 = vmatpush1.msra.mxu0 0.0
    %360 = vmatprep.subr.mxu0 0.0
    %361 = vmatpush1.msra.mxu0 0.0
    %362 = vmatprep.subr.mxu0 0.0
    %363 = vmatpush1.msra.mxu0 0.0
    %364 = vmatprep.subr.mxu0 0.0
    %365 = vmatpush1.msra.mxu0 0.0
    %366 = vmatprep.subr.mxu0 0.0
    %367 = vmatpush1.msra.mxu0 0.0
    %368 = vmatprep.subr.mxu0 0.0
    %369 = vmatpush1.msra.mxu0 0.0
    %370 = vmatprep.subr.mxu0 0.0
    %371 = vmatpush1.msra.mxu0 0.0
    %372 = vmatprep.subr.mxu0 0.0
    %373 = vmatpush1.msra.mxu0 0.0
    %374 = vmatprep.subr.mxu0 0.0
    %375 = vmatpush1.msra.mxu0 0.0
    %376 = vmatprep.subr.mxu0 0.0
    %377 = vmatpush1.msra.mxu0 0.0
    %378 = vmatprep.subr.mxu0 0.0
    %379 = vmatpush1.msra.mxu0 0.0
    %380 = vmatprep.subr.mxu0 0.0
    %381 = vmatpush1.msra.mxu0 0.0
    %382 = vmatprep.subr.mxu0 0.0
    %383 = vmatpush1.msra.mxu0 0.0
    %384 = vmatprep.subr.mxu0 0.0
    %385 = vmatpush1.msra.mxu0 0.0
    %386 = vmatprep.subr.mxu0 0.0
    %387 = vmatpush1.msra.mxu0 0.0
    %388 = vmatprep.mubr.f32.mxu0 0.0
    %389 = vmatmul.mubr.f32.gmra.mrb[0].mxu0 %v322
    %v390 = vpop.f32.mrb[0].mxu0
    %v391 = vadd.f32 0.0, %v390
    %v392 = vpop.f32.mrb[0].mxu0
    %393 = vdwg.mxu0
    %v394 = vadd.f32 %v171, %v391
    %v395 = vxor.u32 %v394, 2147483648
    %v396 = vmul.f32 %v395, 1.442695
    %v397 = vpow.pop %v396
    %v398 = vadd.f32 %v397, 1.0
    %v399 = vrcp.pop %v398
    %v400 = vmul.f32 1.0, %v399
    %v401 = vadd.f32 %v391, %v297
    %403 = vrot.lane.b32.xlu0 %v401, 48
    %v404 = vpop.permute.xlu0 %403
    %v406 = vmul.f32 %v400, %v404
    %408 = vrot.lane.b32.xlu0 %v406, 80
    %v409 = vpop.permute.xlu0 %408
    %v411 = vadd.f32 %v171, %v409
    %v412 = vtanh.pop %v411
    %v413 = vsub.f32 1.0, %v400
    %415 = vrot.lane.b32.xlu0 %v412, 88
    %v416 = vpop.permute.xlu0 %415
    %v418 = vmul.f32 %v413, %v416
    %v419 = vmul.f32 %v400, %v318
    %v420 = vadd.f32 %v418, %v419
    %422 = vrot.lane.b32.xlu0 %v420, 88
    %v423 = vpop.permute.xlu0 %422
    %v424 = vsel %vm210, %v423, 0
    %426 = vmatprep.subr.mxu0 0.0
    %427 = vmatpush1.msra.mxu0 %v204
    %428 = vmatprep.subr.mxu0 0.0
    %429 = vmatpush1.msra.mxu0 %v205
    %430 = vmatprep.subr.mxu0 0.0
    %431 = vmatpush1.msra.mxu0 %v206
    %432 = vmatprep.subr.mxu0 0.0
    %433 = vmatpush1.msra.mxu0 %v207
    %434 = vmatprep.subr.mxu0 0.0
    %435 = vmatpush1.msra.mxu0 %v208
    %436 = vmatprep.subr.mxu0 0.0
    %437 = vmatpush1.msra.mxu0 0.0
    %438 = vmatprep.subr.mxu0 0.0
    %439 = vmatpush1.msra.mxu0 0.0
    %440 = vmatprep.subr.mxu0 0.0
    %441 = vmatpush1.msra.mxu0 0.0
    %442 = vmatprep.subr.mxu0 0.0
    %443 = vmatpush1.msra.mxu0 0.0
    %444 = vmatprep.subr.mxu0 0.0
    %445 = vmatpush1.msra.mxu0 0.0
    %446 = vmatprep.subr.mxu0 0.0
    %447 = vmatpush1.msra.mxu0 0.0
    %448 = vmatprep.subr.mxu0 0.0
    %449 = vmatpush1.msra.mxu0 0.0
    %450 = vmatprep.subr.mxu0 0.0
    %451 = vmatpush1.msra.mxu0 0.0
    %452 = vmatprep.subr.mxu0 0.0
    %453 = vmatpush1.msra.mxu0 0.0
    %454 = vmatprep.subr.mxu0 0.0
    %455 = vmatpush1.msra.mxu0 0.0
    %456 = vmatprep.subr.mxu0 0.0
    %457 = vmatpush1.msra.mxu0 0.0
    %458 = vmatprep.subr.mxu0 0.0
    %459 = vmatpush1.msra.mxu0 0.0
    %460 = vmatprep.subr.mxu0 0.0
    %461 = vmatpush1.msra.mxu0 0.0
    %462 = vmatprep.subr.mxu0 0.0
    %463 = vmatpush1.msra.mxu0 0.0
    %464 = vmatprep.subr.mxu0 0.0
    %465 = vmatpush1.msra.mxu0 0.0
    %466 = vmatprep.subr.mxu0 0.0
    %467 = vmatpush1.msra.mxu0 0.0
    %468 = vmatprep.subr.mxu0 0.0
    %469 = vmatpush1.msra.mxu0 0.0
    %470 = vmatprep.subr.mxu0 0.0
    %471 = vmatpush1.msra.mxu0 0.0
    %472 = vmatprep.subr.mxu0 0.0
    %473 = vmatpush1.msra.mxu0 0.0
    %474 = vmatprep.subr.mxu0 0.0
    %475 = vmatpush1.msra.mxu0 0.0
    %476 = vmatprep.subr.mxu0 0.0
    %477 = vmatpush1.msra.mxu0 0.0
    %478 = vmatprep.subr.mxu0 0.0
    %479 = vmatpush1.msra.mxu0 0.0
    %480 = vmatprep.subr.mxu0 0.0
    %481 = vmatpush1.msra.mxu0 0.0
    %482 = vmatprep.subr.mxu0 0.0
    %483 = vmatpush1.msra.mxu0 0.0
    %484 = vmatprep.subr.mxu0 0.0
    %485 = vmatpush1.msra.mxu0 0.0
    %486 = vmatprep.subr.mxu0 0.0
    %487 = vmatpush1.msra.mxu0 0.0
    %488 = vmatprep.subr.mxu0 0.0
    %489 = vmatpush1.msra.mxu0 0.0
    %490 = vmatprep.mubr.f32.mxu0 0.0
    %491 = vmatmul.mubr.f32.gmra.mrb[0].mxu0 %v424
    %v492 = vpop.f32.mrb[0].mxu0
    %v493 = vadd.f32 0.0, %v492
    %v494 = vpop.f32.mrb[0].mxu0
    %495 = vdwg.mxu0
    %v496 = vadd.f32 %v176, %v493
    %v497 = vxor.u32 %v496, 2147483648
    %v498 = vmul.f32 %v497, 1.442695
    %v499 = vpow.pop %v498
    %v500 = vadd.f32 %v499, 1.0
    %v501 = vrcp.pop %v500
    %v502 = vmul.f32 1.0, %v501
    %v503 = vadd.f32 %v493, %v297
    %505 = vrot.lane.b32.xlu0 %v503, 48
    %v506 = vpop.permute.xlu0 %505
    %v508 = vmul.f32 %v502, %v506
    %510 = vrot.lane.b32.xlu0 %v508, 80
    %v511 = vpop.permute.xlu0 %510
    %v513 = vadd.f32 %v176, %v511
    %v514 = vtanh.pop %v513
    %v515 = vsub.f32 1.0, %v502
    %517 = vrot.lane.b32.xlu0 %v514, 88
    %v518 = vpop.permute.xlu0 %517
    %v520 = vmul.f32 %v515, %v518
    %v521 = vmul.f32 %v502, %v420
    %v522 = vadd.f32 %v520, %v521
    %524 = vrot.lane.b32.xlu0 %v522, 88
    %v525 = vpop.permute.xlu0 %524
    %v526 = vsel %vm210, %v525, 0
    %528 = vmatprep.subr.mxu0 0.0
    %529 = vmatpush1.msra.mxu0 %v204
    %530 = vmatprep.subr.mxu0 0.0
    %531 = vmatpush1.msra.mxu0 %v205
    %532 = vmatprep.subr.mxu0 0.0
    %533 = vmatpush1.msra.mxu0 %v206
    %534 = vmatprep.subr.mxu0 0.0
    %535 = vmatpush1.msra.mxu0 %v207
    %536 = vmatprep.subr.mxu0 0.0
    %537 = vmatpush1.msra.mxu0 %v208
    %538 = vmatprep.subr.mxu0 0.0
    %539 = vmatpush1.msra.mxu0 0.0
    %540 = vmatprep.subr.mxu0 0.0
    %541 = vmatpush1.msra.mxu0 0.0
    %542 = vmatprep.subr.mxu0 0.0
    %543 = vmatpush1.msra.mxu0 0.0
    %544 = vmatprep.subr.mxu0 0.0
    %545 = vmatpush1.msra.mxu0 0.0
    %546 = vmatprep.subr.mxu0 0.0
    %547 = vmatpush1.msra.mxu0 0.0
    %548 = vmatprep.subr.mxu0 0.0
    %549 = vmatpush1.msra.mxu0 0.0
    %550 = vmatprep.subr.mxu0 0.0
    %551 = vmatpush1.msra.mxu0 0.0
    %552 = vmatprep.subr.mxu0 0.0
    %553 = vmatpush1.msra.mxu0 0.0
    %554 = vmatprep.subr.mxu0 0.0
    %555 = vmatpush1.msra.mxu0 0.0
    %556 = vmatprep.subr.mxu0 0.0
    %557 = vmatpush1.msra.mxu0 0.0
    %558 = vmatprep.subr.mxu0 0.0
    %559 = vmatpush1.msra.mxu0 0.0
    %560 = vmatprep.subr.mxu0 0.0
    %561 = vmatpush1.msra.mxu0 0.0
    %562 = vmatprep.subr.mxu0 0.0
    %563 = vmatpush1.msra.mxu0 0.0
    %564 = vmatprep.subr.mxu0 0.0
    %565 = vmatpush1.msra.mxu0 0.0
    %566 = vmatprep.subr.mxu0 0.0
    %567 = vmatpush1.msra.mxu0 0.0
    %568 = vmatprep.subr.mxu0 0.0
    %569 = vmatpush1.msra.mxu0 0.0
    %570 = vmatprep.subr.mxu0 0.0
    %571 = vmatpush1.msra.mxu0 0.0
    %572 = vmatprep.subr.mxu0 0.0
    %573 = vmatpush1.msra.mxu0 0.0
    %574 = vmatprep.subr.mxu0 0.0
    %575 = vmatpush1.msra.mxu0 0.0
    %576 = vmatprep.subr.mxu0 0.0
    %577 = vmatpush1.msra.mxu0 0.0
    %578 = vmatprep.subr.mxu0 0.0
    %579 = vmatpush1.msra.mxu0 0.0
    %580 = vmatprep.subr.mxu0 0.0
    %581 = vmatpush1.msra.mxu0 0.0
    %582 = vmatprep.subr.mxu0 0.0
    %583 = vmatpush1.msra.mxu0 0.0
    %584 = vmatprep.subr.mxu0 0.0
    %585 = vmatpush1.msra.mxu0 0.0
    %586 = vmatprep.subr.mxu0 0.0
    %587 = vmatpush1.msra.mxu0 0.0
    %588 = vmatprep.subr.mxu0 0.0
    %589 = vmatpush1.msra.mxu0 0.0
    %590 = vmatprep.subr.mxu0 0.0
    %591 = vmatpush1.msra.mxu0 0.0
    %592 = vmatprep.mubr.f32.mxu0 0.0
    %593 = vmatmul.mubr.f32.gmra.mrb[0].mxu0 %v526
    %v594 = vpop.f32.mrb[0].mxu0
    %v595 = vadd.f32 0.0, %v594
    %v596 = vpop.f32.mrb[0].mxu0
    %597 = vdwg.mxu0
    %v598 = vadd.f32 %v181, %v595
    %v599 = vxor.u32 %v598, 2147483648
    %v600 = vmul.f32 %v599, 1.442695
    %v601 = vpow.pop %v600
    %v602 = vadd.f32 %v601, 1.0
    %v603 = vrcp.pop %v602
    %v604 = vmul.f32 1.0, %v603
    %v605 = vadd.f32 %v595, %v297
    %607 = vrot.lane.b32.xlu0 %v605, 48
    %v608 = vpop.permute.xlu0 %607
    %v610 = vmul.f32 %v604, %v608
    %612 = vrot.lane.b32.xlu0 %v610, 80
    %v613 = vpop.permute.xlu0 %612
    %v615 = vadd.f32 %v181, %v613
    %v616 = vtanh.pop %v615
    %v617 = vsub.f32 1.0, %v604
    %619 = vrot.lane.b32.xlu0 %v616, 88
    %v620 = vpop.permute.xlu0 %619
    %v622 = vmul.f32 %v617, %v620
    %v623 = vmul.f32 %v604, %v522
    %v624 = vadd.f32 %v622, %v623
    %626 = vrot.lane.b32.xlu0 %v624, 88
    %v627 = vpop.permute.xlu0 %626
    %v628 = vsel %vm210, %v627, 0
    %630 = vmatprep.subr.mxu0 0.0
    %631 = vmatpush1.msra.mxu0 %v204
    %632 = vmatprep.subr.mxu0 0.0
    %633 = vmatpush1.msra.mxu0 %v205
    %634 = vmatprep.subr.mxu0 0.0
    %635 = vmatpush1.msra.mxu0 %v206
    %636 = vmatprep.subr.mxu0 0.0
    %637 = vmatpush1.msra.mxu0 %v207
    %638 = vmatprep.subr.mxu0 0.0
    %639 = vmatpush1.msra.mxu0 %v208
    %640 = vmatprep.subr.mxu0 0.0
    %641 = vmatpush1.msra.mxu0 0.0
    %642 = vmatprep.subr.mxu0 0.0
    %643 = vmatpush1.msra.mxu0 0.0
    %644 = vmatprep.subr.mxu0 0.0
    %645 = vmatpush1.msra.mxu0 0.0
    %646 = vmatprep.subr.mxu0 0.0
    %647 = vmatpush1.msra.mxu0 0.0
    %648 = vmatprep.subr.mxu0 0.0
    %649 = vmatpush1.msra.mxu0 0.0
    %650 = vmatprep.subr.mxu0 0.0
    %651 = vmatpush1.msra.mxu0 0.0
    %652 = vmatprep.subr.mxu0 0.0
    %653 = vmatpush1.msra.mxu0 0.0
    %654 = vmatprep.subr.mxu0 0.0
    %655 = vmatpush1.msra.mxu0 0.0
    %656 = vmatprep.subr.mxu0 0.0
    %657 = vmatpush1.msra.mxu0 0.0
    %658 = vmatprep.subr.mxu0 0.0
    %659 = vmatpush1.msra.mxu0 0.0
    %660 = vmatprep.subr.mxu0 0.0
    %661 = vmatpush1.msra.mxu0 0.0
    %662 = vmatprep.subr.mxu0 0.0
    %663 = vmatpush1.msra.mxu0 0.0
    %664 = vmatprep.subr.mxu0 0.0
    %665 = vmatpush1.msra.mxu0 0.0
    %666 = vmatprep.subr.mxu0 0.0
    %667 = vmatpush1.msra.mxu0 0.0
    %668 = vmatprep.subr.mxu0 0.0
    %669 = vmatpush1.msra.mxu0 0.0
    %670 = vmatprep.subr.mxu0 0.0
    %671 = vmatpush1.msra.mxu0 0.0
    %672 = vmatprep.subr.mxu0 0.0
    %673 = vmatpush1.msra.mxu0 0.0
    %674 = vmatprep.subr.mxu0 0.0
    %675 = vmatpush1.msra.mxu0 0.0
    %676 = vmatprep.subr.mxu0 0.0
    %677 = vmatpush1.msra.mxu0 0.0
    %678 = vmatprep.subr.mxu0 0.0
    %679 = vmatpush1.msra.mxu0 0.0
    %680 = vmatprep.subr.mxu0 0.0
    %681 = vmatpush1.msra.mxu0 0.0
    %682 = vmatprep.subr.mxu0 0.0
    %683 = vmatpush1.msra.mxu0 0.0
    %684 = vmatprep.subr.mxu0 0.0
    %685 = vmatpush1.msra.mxu0 0.0
    %686 = vmatprep.subr.mxu0 0.0
    %687 = vmatpush1.msra.mxu0 0.0
    %688 = vmatprep.subr.mxu0 0.0
    %689 = vmatpush1.msra.mxu0 0.0
    %690 = vmatprep.subr.mxu0 0.0
    %691 = vmatpush1.msra.mxu0 0.0
    %692 = vmatprep.subr.mxu0 0.0
    %693 = vmatpush1.msra.mxu0 0.0
    %694 = vmatprep.mubr.f32.mxu0 0.0
    %695 = vmatmul.mubr.f32.gmra.mrb[0].mxu0 %v628
    %v696 = vpop.f32.mrb[0].mxu0
    %v697 = vadd.f32 0.0, %v696
    %v698 = vpop.f32.mrb[0].mxu0
    %699 = vdwg.mxu0
    %v700 = vadd.f32 %v186, %v697
    %v701 = vxor.u32 %v700, 2147483648
    %v702 = vmul.f32 %v701, 1.442695
    %v703 = vpow.pop %v702
    %v704 = vadd.f32 %v703, 1.0
    %v705 = vrcp.pop %v704
    %v706 = vmul.f32 1.0, %v705
    %v707 = vadd.f32 %v697, %v297
    %709 = vrot.lane.b32.xlu0 %v707, 48
    %v710 = vpop.permute.xlu0 %709
    %v712 = vmul.f32 %v706, %v710
    %714 = vrot.lane.b32.xlu0 %v712, 80
    %v715 = vpop.permute.xlu0 %714
    %v717 = vadd.f32 %v186, %v715
    %v718 = vtanh.pop %v717
    %v719 = vsub.f32 1.0, %v706
    %721 = vrot.lane.b32.xlu0 %v718, 88
    %v722 = vpop.permute.xlu0 %721
    %v724 = vmul.f32 %v719, %v722
    %v725 = vmul.f32 %v706, %v624
    %v726 = vadd.f32 %v724, %v725
    %728 = vrot.lane.b32.xlu0 %v726, 88
    %v729 = vpop.permute.xlu0 %728
    %v730 = vsel %vm210, %v729, 0
    %732 = vmatprep.subr.mxu0 0.0
    %733 = vmatpush1.msra.mxu0 %v204
    %734 = vmatprep.subr.mxu0 0.0
    %735 = vmatpush1.msra.mxu0 %v205
    %736 = vmatprep.subr.mxu0 0.0
    %737 = vmatpush1.msra.mxu0 %v206
    %738 = vmatprep.subr.mxu0 0.0
    %739 = vmatpush1.msra.mxu0 %v207
    %740 = vmatprep.subr.mxu0 0.0
    %741 = vmatpush1.msra.mxu0 %v208
    %742 = vmatprep.subr.mxu0 0.0
    %743 = vmatpush1.msra.mxu0 0.0
    %744 = vmatprep.subr.mxu0 0.0
    %745 = vmatpush1.msra.mxu0 0.0
    %746 = vmatprep.subr.mxu0 0.0
    %747 = vmatpush1.msra.mxu0 0.0
    %748 = vmatprep.subr.mxu0 0.0
    %749 = vmatpush1.msra.mxu0 0.0
    %750 = vmatprep.subr.mxu0 0.0
    %751 = vmatpush1.msra.mxu0 0.0
    %752 = vmatprep.subr.mxu0 0.0
    %753 = vmatpush1.msra.mxu0 0.0
    %754 = vmatprep.subr.mxu0 0.0
    %755 = vmatpush1.msra.mxu0 0.0
    %756 = vmatprep.subr.mxu0 0.0
    %757 = vmatpush1.msra.mxu0 0.0
    %758 = vmatprep.subr.mxu0 0.0
    %759 = vmatpush1.msra.mxu0 0.0
    %760 = vmatprep.subr.mxu0 0.0
    %761 = vmatpush1.msra.mxu0 0.0
    %762 = vmatprep.subr.mxu0 0.0
    %763 = vmatpush1.msra.mxu0 0.0
    %764 = vmatprep.subr.mxu0 0.0
    %765 = vmatpush1.msra.mxu0 0.0
    %766 = vmatprep.subr.mxu0 0.0
    %767 = vmatpush1.msra.mxu0 0.0
    %768 = vmatprep.subr.mxu0 0.0
    %769 = vmatpush1.msra.mxu0 0.0
    %770 = vmatprep.subr.mxu0 0.0
    %771 = vmatpush1.msra.mxu0 0.0
    %772 = vmatprep.subr.mxu0 0.0
    %773 = vmatpush1.msra.mxu0 0.0
    %774 = vmatprep.subr.mxu0 0.0
    %775 = vmatpush1.msra.mxu0 0.0
    %776 = vmatprep.subr.mxu0 0.0
    %777 = vmatpush1.msra.mxu0 0.0
    %778 = vmatprep.subr.mxu0 0.0
    %779 = vmatpush1.msra.mxu0 0.0
    %780 = vmatprep.subr.mxu0 0.0
    %781 = vmatpush1.msra.mxu0 0.0
    %782 = vmatprep.subr.mxu0 0.0
    %783 = vmatpush1.msra.mxu0 0.0
    %784 = vmatprep.subr.mxu0 0.0
    %785 = vmatpush1.msra.mxu0 0.0
    %786 = vmatprep.subr.mxu0 0.0
    %787 = vmatpush1.msra.mxu0 0.0
    %788 = vmatprep.subr.mxu0 0.0
    %789 = vmatpush1.msra.mxu0 0.0
    %790 = vmatprep.subr.mxu0 0.0
    %791 = vmatpush1.msra.mxu0 0.0
    %792 = vmatprep.subr.mxu0 0.0
    %793 = vmatpush1.msra.mxu0 0.0
    %794 = vmatprep.subr.mxu0 0.0
    %795 = vmatpush1.msra.mxu0 0.0
    %796 = vmatprep.mubr.f32.mxu0 0.0
    %797 = vmatmul.mubr.f32.gmra.mrb[0].mxu0 %v730
    %v798 = vpop.f32.mrb[0].mxu0
    %v799 = vadd.f32 0.0, %v798
    %v800 = vpop.f32.mrb[0].mxu0
    %801 = vdwg.mxu0
    %v802 = vadd.f32 %v191, %v799
    %v803 = vxor.u32 %v802, 2147483648
    %v804 = vmul.f32 %v803, 1.442695
    %v805 = vpow.pop %v804
    %v806 = vadd.f32 %v805, 1.0
    %v807 = vrcp.pop %v806
    %v808 = vmul.f32 1.0, %v807
    %v809 = vadd.f32 %v799, %v297
    %811 = vrot.lane.b32.xlu0 %v809, 48
    %v812 = vpop.permute.xlu0 %811
    %v814 = vmul.f32 %v808, %v812
    %816 = vrot.lane.b32.xlu0 %v814, 80
    %v817 = vpop.permute.xlu0 %816
    %v819 = vadd.f32 %v191, %v817
    %v820 = vtanh.pop %v819
    %v821 = vsub.f32 1.0, %v808
    %823 = vrot.lane.b32.xlu0 %v820, 88
    %v824 = vpop.permute.xlu0 %823
    %v826 = vmul.f32 %v821, %v824
    %v827 = vmul.f32 %v808, %v726
    %v828 = vadd.f32 %v826, %v827
    %830 = vrot.lane.b32.xlu0 %v828, 88
    %v831 = vpop.permute.xlu0 %830
    %v832 = vsel %vm210, %v831, 0
    %834 = vmatprep.subr.mxu0 0.0
    %835 = vmatpush1.msra.mxu0 %v204
    %836 = vmatprep.subr.mxu0 0.0
    %837 = vmatpush1.msra.mxu0 %v205
    %838 = vmatprep.subr.mxu0 0.0
    %839 = vmatpush1.msra.mxu0 %v206
    %840 = vmatprep.subr.mxu0 0.0
    %841 = vmatpush1.msra.mxu0 %v207
    %842 = vmatprep.subr.mxu0 0.0
    %843 = vmatpush1.msra.mxu0 %v208
    %844 = vmatprep.subr.mxu0 0.0
    %845 = vmatpush1.msra.mxu0 0.0
    %846 = vmatprep.subr.mxu0 0.0
    %847 = vmatpush1.msra.mxu0 0.0
    %848 = vmatprep.subr.mxu0 0.0
    %849 = vmatpush1.msra.mxu0 0.0
    %850 = vmatprep.subr.mxu0 0.0
    %851 = vmatpush1.msra.mxu0 0.0
    %852 = vmatprep.subr.mxu0 0.0
    %853 = vmatpush1.msra.mxu0 0.0
    %854 = vmatprep.subr.mxu0 0.0
    %855 = vmatpush1.msra.mxu0 0.0
    %856 = vmatprep.subr.mxu0 0.0
    %857 = vmatpush1.msra.mxu0 0.0
    %858 = vmatprep.subr.mxu0 0.0
    %859 = vmatpush1.msra.mxu0 0.0
    %860 = vmatprep.subr.mxu0 0.0
    %861 = vmatpush1.msra.mxu0 0.0
    %862 = vmatprep.subr.mxu0 0.0
    %863 = vmatpush1.msra.mxu0 0.0
    %864 = vmatprep.subr.mxu0 0.0
    %865 = vmatpush1.msra.mxu0 0.0
    %866 = vmatprep.subr.mxu0 0.0
    %867 = vmatpush1.msra.mxu0 0.0
    %868 = vmatprep.subr.mxu0 0.0
    %869 = vmatpush1.msra.mxu0 0.0
    %870 = vmatprep.subr.mxu0 0.0
    %871 = vmatpush1.msra.mxu0 0.0
    %872 = vmatprep.subr.mxu0 0.0
    %873 = vmatpush1.msra.mxu0 0.0
    %874 = vmatprep.subr.mxu0 0.0
    %875 = vmatpush1.msra.mxu0 0.0
    %876 = vmatprep.subr.mxu0 0.0
    %877 = vmatpush1.msra.mxu0 0.0
    %878 = vmatprep.subr.mxu0 0.0
    %879 = vmatpush1.msra.mxu0 0.0
    %880 = vmatprep.subr.mxu0 0.0
    %881 = vmatpush1.msra.mxu0 0.0
    %882 = vmatprep.subr.mxu0 0.0
    %883 = vmatpush1.msra.mxu0 0.0
    %884 = vmatprep.subr.mxu0 0.0
    %885 = vmatpush1.msra.mxu0 0.0
    %886 = vmatprep.subr.mxu0 0.0
    %887 = vmatpush1.msra.mxu0 0.0
    %888 = vmatprep.subr.mxu0 0.0
    %889 = vmatpush1.msra.mxu0 0.0
    %890 = vmatprep.subr.mxu0 0.0
    %891 = vmatpush1.msra.mxu0 0.0
    %892 = vmatprep.subr.mxu0 0.0
    %893 = vmatpush1.msra.mxu0 0.0
    %894 = vmatprep.subr.mxu0 0.0
    %895 = vmatpush1.msra.mxu0 0.0
    %896 = vmatprep.subr.mxu0 0.0
    %897 = vmatpush1.msra.mxu0 0.0
    %898 = vmatprep.mubr.f32.mxu0 0.0
    %899 = vmatmul.mubr.f32.gmra.mrb[0].mxu0 %v832
    %v900 = vpop.f32.mrb[0].mxu0
    %v901 = vadd.f32 0.0, %v900
    %v902 = vpop.f32.mrb[0].mxu0
    %903 = vdwg.mxu0
    %v904 = vadd.f32 %v196, %v901
    %v905 = vxor.u32 %v904, 2147483648
    %v906 = vmul.f32 %v905, 1.442695
    %v907 = vpow.pop %v906
    %v908 = vadd.f32 %v907, 1.0
    %v909 = vrcp.pop %v908
    %v910 = vmul.f32 1.0, %v909
    %v911 = vadd.f32 %v901, %v297
    %913 = vrot.lane.b32.xlu0 %v911, 48
    %v914 = vpop.permute.xlu0 %913
    %v916 = vmul.f32 %v910, %v914
    %918 = vrot.lane.b32.xlu0 %v916, 80
    %v919 = vpop.permute.xlu0 %918
    %v921 = vadd.f32 %v196, %v919
    %v922 = vtanh.pop %v921
    %v923 = vsub.f32 1.0, %v910
    %925 = vrot.lane.b32.xlu0 %v922, 88
    %v926 = vpop.permute.xlu0 %925
    %v928 = vmul.f32 %v923, %v926
    %v929 = vmul.f32 %v910, %v828
    %v930 = vadd.f32 %v928, %v929
    %932 = vrot.lane.b32.xlu0 %v930, 88
    %v933 = vpop.permute.xlu0 %932
    %v934 = vsel %vm210, %v933, 0
    %936 = vmatprep.subr.mxu0 0.0
    %937 = vmatpush1.msra.mxu0 %v204
    %938 = vmatprep.subr.mxu0 0.0
    %939 = vmatpush1.msra.mxu0 %v205
    %940 = vmatprep.subr.mxu0 0.0
    %941 = vmatpush1.msra.mxu0 %v206
    %942 = vmatprep.subr.mxu0 0.0
    %943 = vmatpush1.msra.mxu0 %v207
    %944 = vmatprep.subr.mxu0 0.0
    %945 = vmatpush1.msra.mxu0 %v208
    %946 = vmatprep.subr.mxu0 0.0
    %947 = vmatpush1.msra.mxu0 0.0
    %948 = vmatprep.subr.mxu0 0.0
    %949 = vmatpush1.msra.mxu0 0.0
    %950 = vmatprep.subr.mxu0 0.0
    %951 = vmatpush1.msra.mxu0 0.0
    %952 = vmatprep.subr.mxu0 0.0
    %953 = vmatpush1.msra.mxu0 0.0
    %954 = vmatprep.subr.mxu0 0.0
    %955 = vmatpush1.msra.mxu0 0.0
    %956 = vmatprep.subr.mxu0 0.0
    %957 = vmatpush1.msra.mxu0 0.0
    %958 = vmatprep.subr.mxu0 0.0
    %959 = vmatpush1.msra.mxu0 0.0
    %960 = vmatprep.subr.mxu0 0.0
    %961 = vmatpush1.msra.mxu0 0.0
    %962 = vmatprep.subr.mxu0 0.0
    %963 = vmatpush1.msra.mxu0 0.0
    %964 = vmatprep.subr.mxu0 0.0
    %965 = vmatpush1.msra.mxu0 0.0
    %966 = vmatprep.subr.mxu0 0.0
    %967 = vmatpush1.msra.mxu0 0.0
    %968 = vmatprep.subr.mxu0 0.0
    %969 = vmatpush1.msra.mxu0 0.0
    %970 = vmatprep.subr.mxu0 0.0
    %971 = vmatpush1.msra.mxu0 0.0
    %972 = vmatprep.subr.mxu0 0.0
    %973 = vmatpush1.msra.mxu0 0.0
    %974 = vmatprep.subr.mxu0 0.0
    %975 = vmatpush1.msra.mxu0 0.0
    %976 = vmatprep.subr.mxu0 0.0
    %977 = vmatpush1.msra.mxu0 0.0
    %978 = vmatprep.subr.mxu0 0.0
    %979 = vmatpush1.msra.mxu0 0.0
    %980 = vmatprep.subr.mxu0 0.0
    %981 = vmatpush1.msra.mxu0 0.0
    %982 = vmatprep.subr.mxu0 0.0
    %983 = vmatpush1.msra.mxu0 0.0
    %984 = vmatprep.subr.mxu0 0.0
    %985 = vmatpush1.msra.mxu0 0.0
    %986 = vmatprep.subr.mxu0 0.0
    %987 = vmatpush1.msra.mxu0 0.0
    %988 = vmatprep.subr.mxu0 0.0
    %989 = vmatpush1.msra.mxu0 0.0
    %990 = vmatprep.subr.mxu0 0.0
    %991 = vmatpush1.msra.mxu0 0.0
    %992 = vmatprep.subr.mxu0 0.0
    %993 = vmatpush1.msra.mxu0 0.0
    %994 = vmatprep.subr.mxu0 0.0
    %995 = vmatpush1.msra.mxu0 0.0
    %996 = vmatprep.subr.mxu0 0.0
    %997 = vmatpush1.msra.mxu0 0.0
    %998 = vmatprep.subr.mxu0 0.0
    %999 = vmatpush1.msra.mxu0 0.0
    %1000 = vmatprep.mubr.f32.mxu0 0.0
    %1001 = vmatmul.mubr.f32.gmra.mrb[0].mxu0 %v934
    %v1002 = vpop.f32.mrb[0].mxu0
    %v1003 = vadd.f32 0.0, %v1002
    %v1004 = vpop.f32.mrb[0].mxu0
    %1005 = vdwg.mxu0
    %v1006 = vadd.f32 %v201, %v1003
    %v1007 = vxor.u32 %v1006, 2147483648
    %v1008 = vmul.f32 %v1007, 1.442695
    %v1009 = vpow.pop %v1008
    %v1010 = vadd.f32 %v1009, 1.0
    %v1011 = vrcp.pop %v1010
    %v1012 = vmul.f32 1.0, %v1011
    %v1013 = vadd.f32 %v1003, %v297
    %1015 = vrot.lane.b32.xlu0 %v1013, 48
    %v1016 = vpop.permute.xlu0 %1015
    %v1018 = vmul.f32 %v1012, %v1016
    %1020 = vrot.lane.b32.xlu0 %v1018, 80
    %v1021 = vpop.permute.xlu0 %1020
    %v1023 = vadd.f32 %v201, %v1021
    %v1024 = vtanh.pop %v1023
    %v1025 = vsub.f32 1.0, %v1012
    %1027 = vrot.lane.b32.xlu0 %v1024, 88
    %v1028 = vpop.permute.xlu0 %1027
    %v1030 = vmul.f32 %v1025, %v1028
    %v1031 = vmul.f32 %v1012, %v930
    %v1032 = vadd.f32 %v1030, %v1031
    %1034 = vrot.lane.b32.xlu0 %v1032, 88
    %v1035 = vpop.permute.xlu0 %1034
    %1037 = vst.msk [vmem:[#allocation6] sm:$0xff] %vm210, %v1035
    %v1038 = vld [vmem:[%s6] sm:$0xff]
    %v1039 = vld [vmem:[%s6 + $0x8] sm:$0xff]
    %v1040 = vld [vmem:[%s6 + $0x10] sm:$0xff]
    %v1041 = vld [vmem:[%s6 + $0x18] sm:$0xff]
    %v1042 = vld [vmem:[%s6 + $0x20] sm:$0xff]
    %v1043 = vld [vmem:[%s7] sm:$0x1]
    %v1045 = vlaneseq
    %v1046 = vshrl.u32 %v1045, 7
    %v1047 = vsub.s32 0, %v1046
    %v1048 = vrot.slane %v1043, %v1047
    %v1050 = vsel %vm210, %v1035, 0
    %1052 = vmatprep.subr.mxu0 0.0
    %1053 = vmatpush1.msra.mxu0 %v1038
    %1054 = vmatprep.subr.mxu0 0.0
    %1055 = vmatpush1.msra.mxu0 %v1039
    %1056 = vmatprep.subr.mxu0 0.0
    %1057 = vmatpush1.msra.mxu0 %v1040
    %1058 = vmatprep.subr.mxu0 0.0
    %1059 = vmatpush1.msra.mxu0 %v1041
    %1060 = vmatprep.subr.mxu0 0.0
    %1061 = vmatpush1.msra.mxu0 %v1042
    %1062 = vmatprep.subr.mxu0 0.0
    %1063 = vmatpush1.msra.mxu0 0.0
    %1064 = vmatprep.subr.mxu0 0.0
    %1065 = vmatpush1.msra.mxu0 0.0
    %1066 = vmatprep.subr.mxu0 0.0
    %1067 = vmatpush1.msra.mxu0 0.0
    %1068 = vmatprep.subr.mxu0 0.0
    %1069 = vmatpush1.msra.mxu0 0.0
    %1070 = vmatprep.subr.mxu0 0.0
    %1071 = vmatpush1.msra.mxu0 0.0
    %1072 = vmatprep.subr.mxu0 0.0
    %1073 = vmatpush1.msra.mxu0 0.0
    %1074 = vmatprep.subr.mxu0 0.0
    %1075 = vmatpush1.msra.mxu0 0.0
    %1076 = vmatprep.subr.mxu0 0.0
    %1077 = vmatpush1.msra.mxu0 0.0
    %1078 = vmatprep.subr.mxu0 0.0
    %1079 = vmatpush1.msra.mxu0 0.0
    %1080 = vmatprep.subr.mxu0 0.0
    %1081 = vmatpush1.msra.mxu0 0.0
    %1082 = vmatprep.subr.mxu0 0.0
    %1083 = vmatpush1.msra.mxu0 0.0
    %1084 = vmatprep.subr.mxu0 0.0
    %1085 = vmatpush1.msra.mxu0 0.0
    %1086 = vmatprep.subr.mxu0 0.0
    %1087 = vmatpush1.msra.mxu0 0.0
    %1088 = vmatprep.subr.mxu0 0.0
    %1089 = vmatpush1.msra.mxu0 0.0
    %1090 = vmatprep.subr.mxu0 0.0
    %1091 = vmatpush1.msra.mxu0 0.0
    %1092 = vmatprep.subr.mxu0 0.0
    %1093 = vmatpush1.msra.mxu0 0.0
    %1094 = vmatprep.subr.mxu0 0.0
    %1095 = vmatpush1.msra.mxu0 0.0
    %1096 = vmatprep.subr.mxu0 0.0
    %1097 = vmatpush1.msra.mxu0 0.0
    %1098 = vmatprep.subr.mxu0 0.0
    %1099 = vmatpush1.msra.mxu0 0.0
    %1100 = vmatprep.subr.mxu0 0.0
    %1101 = vmatpush1.msra.mxu0 0.0
    %1102 = vmatprep.subr.mxu0 0.0
    %1103 = vmatpush1.msra.mxu0 0.0
    %1104 = vmatprep.subr.mxu0 0.0
    %1105 = vmatpush1.msra.mxu0 0.0
    %1106 = vmatprep.subr.mxu0 0.0
    %1107 = vmatpush1.msra.mxu0 0.0
    %1108 = vmatprep.subr.mxu0 0.0
    %1109 = vmatpush1.msra.mxu0 0.0
    %1110 = vmatprep.subr.mxu0 0.0
    %1111 = vmatpush1.msra.mxu0 0.0
    %1112 = vmatprep.subr.mxu0 0.0
    %1113 = vmatpush1.msra.mxu0 0.0
    %1114 = vmatprep.subr.mxu0 0.0
    %1115 = vmatpush1.msra.mxu0 0.0
    %1116 = vmatprep.mubr.f32.mxu0 0.0
    %1117 = vmatmul.mubr.f32.gmra.mrb[0].mxu0 %v322
    %v1118 = vpop.f32.mrb[0].mxu0
    %v1119 = vadd.f32 %v1048, %v1118
    %v1120 = vpop.f32.mrb[0].mxu0
    %1121 = vmatprep.mubr.f32.mxu0 0.0
    %1122 = vmatmul.mubr.f32.gmra.mrb[0].mxu0 %v424
    %v1123 = vpop.f32.mrb[0].mxu0
    %v1124 = vadd.f32 %v1048, %v1123
    %v1125 = vpop.f32.mrb[0].mxu0
    %1126 = vmatprep.mubr.f32.mxu0 0.0
    %1127 = vmatmul.mubr.f32.gmra.mrb[0].mxu0 %v526
    %v1128 = vpop.f32.mrb[0].mxu0
    %v1129 = vadd.f32 %v1048, %v1128
    %v1130 = vpop.f32.mrb[0].mxu0
    %1131 = vmatprep.mubr.f32.mxu0 0.0
    %1132 = vmatmul.mubr.f32.gmra.mrb[0].mxu0 %v628
    %v1133 = vpop.f32.mrb[0].mxu0
    %v1134 = vadd.f32 %v1048, %v1133
    %v1135 = vpop.f32.mrb[0].mxu0
    %1136 = vmatprep.mubr.f32.mxu0 0.0
    %1137 = vmatmul.mubr.f32.gmra.mrb[0].mxu0 %v730
    %v1138 = vpop.f32.mrb[0].mxu0
    %v1139 = vadd.f32 %v1048, %v1138
    %v1140 = vpop.f32.mrb[0].mxu0
    %1141 = vmatprep.mubr.f32.mxu0 0.0
    %1142 = vmatmul.mubr.f32.gmra.mrb[0].mxu0 %v832
    %v1143 = vpop.f32.mrb[0].mxu0
    %v1144 = vadd.f32 %v1048, %v1143
    %v1145 = vpop.f32.mrb[0].mxu0
    %1146 = vmatprep.mubr.f32.mxu0 0.0
    %1147 = vmatmul.mubr.f32.gmra.mrb[0].mxu0 %v934
    %v1148 = vpop.f32.mrb[0].mxu0
    %v1149 = vadd.f32 %v1048, %v1148
    %v1150 = vpop.f32.mrb[0].mxu0
    %1151 = vmatprep.mubr.f32.mxu0 0.0
    %1152 = vmatmul.mubr.f32.gmra.mrb[0].mxu0 %v1050
    %v1153 = vpop.f32.mrb[0].mxu0
    %v1154 = vadd.f32 %v1048, %v1153
    %v1155 = vpop.f32.mrb[0].mxu0
    %1156 = vdwg.mxu0
    %1165 = vrot.lane.b32.xlu0 %v1119, 88
    %v1166 = vpop.permute.xlu0 %1165
    %1167 = vrot.lane.b32.xlu0 %v1124, 88
    %v1168 = vpop.permute.xlu0 %1167
    %1169 = vrot.lane.b32.xlu0 %v1129, 88
    %v1170 = vpop.permute.xlu0 %1169
    %1171 = vrot.lane.b32.xlu0 %v1134, 88
    %v1172 = vpop.permute.xlu0 %1171
    %1173 = vrot.lane.b32.xlu0 %v1139, 88
    %v1174 = vpop.permute.xlu0 %1173
    %1175 = vrot.lane.b32.xlu0 %v1144, 88
    %v1176 = vpop.permute.xlu0 %1175
    %1177 = vrot.lane.b32.xlu0 %v1149, 88
    %v1178 = vpop.permute.xlu0 %1177
    %1179 = vrot.lane.b32.xlu0 %v1154, 88
    %v1180 = vpop.permute.xlu0 %1179
    %v1181 = vsel %vm210, %v1119, 0
    %v1183 = vsel %vm210, %v1124, 0
    %v1185 = vsel %vm210, %v1129, 0
    %v1187 = vsel %vm210, %v1134, 0
    %v1189 = vsel %vm210, %v1139, 0
    %v1191 = vsel %vm210, %v1144, 0
    %v1193 = vsel %vm210, %v1149, 0
    %v1195 = vsel %vm210, %v1154, 0
    %v1197 = vsel %vm210, %v1166, 0
    %v1199 = vsel %vm210, %v1168, 0
    %v1201 = vsel %vm210, %v1170, 0
    %v1203 = vsel %vm210, %v1172, 0
    %v1205 = vsel %vm210, %v1174, 0
    %v1207 = vsel %vm210, %v1176, 0
    %v1209 = vsel %vm210, %v1178, 0
    %v1211 = vsel %vm210, %v1180, 0
    %1213 = vmatprep.subr.mxu0 0.0
    %1214 = vmatpush1.xpose.msra.mxu0 %v1197
    %1215 = vmatprep.subr.mxu0 0.0
    %1216 = vmatpush1.xpose.msra.mxu0 %v1199
    %1217 = vmatprep.subr.mxu0 0.0
    %1218 = vmatpush1.xpose.msra.mxu0 %v1201
    %1219 = vmatprep.subr.mxu0 0.0
    %1220 = vmatpush1.xpose.msra.mxu0 %v1203
    %1221 = vmatprep.subr.mxu0 0.0
    %1222 = vmatpush1.xpose.msra.mxu0 %v1205
    %1223 = vmatprep.subr.mxu0 0.0
    %1224 = vmatpush1.xpose.msra.mxu0 %v1207
    %1225 = vmatprep.subr.mxu0 0.0
    %1226 = vmatpush1.xpose.msra.mxu0 %v1209
    %1227 = vmatprep.subr.mxu0 0.0
    %1228 = vmatpush1.xpose.msra.mxu0 %v1211
    %1229 = vmatprep.subr.mxu0 0.0
    %1230 = vmatpush1.xpose.msra.mxu0 0.0
    %1231 = vmatprep.subr.mxu0 0.0
    %1232 = vmatpush1.xpose.msra.mxu0 0.0
    %1233 = vmatprep.subr.mxu0 0.0
    %1234 = vmatpush1.xpose.msra.mxu0 0.0
    %1235 = vmatprep.subr.mxu0 0.0
    %1236 = vmatpush1.xpose.msra.mxu0 0.0
    %1237 = vmatprep.subr.mxu0 0.0
    %1238 = vmatpush1.xpose.msra.mxu0 0.0
    %1239 = vmatprep.subr.mxu0 0.0
    %1240 = vmatpush1.xpose.msra.mxu0 0.0
    %1241 = vmatprep.subr.mxu0 0.0
    %1242 = vmatpush1.xpose.msra.mxu0 0.0
    %1243 = vmatprep.subr.mxu0 0.0
    %1244 = vmatpush1.xpose.msra.mxu0 0.0
    %1245 = vmatprep.subr.mxu0 0.0
    %1246 = vmatpush1.xpose.msra.mxu0 0.0
    %1247 = vmatprep.subr.mxu0 0.0
    %1248 = vmatpush1.xpose.msra.mxu0 0.0
    %1249 = vmatprep.subr.mxu0 0.0
    %1250 = vmatpush1.xpose.msra.mxu0 0.0
    %1251 = vmatprep.subr.mxu0 0.0
    %1252 = vmatpush1.xpose.msra.mxu0 0.0
    %1253 = vmatprep.subr.mxu0 0.0
    %1254 = vmatpush1.xpose.msra.mxu0 0.0
    %1255 = vmatprep.subr.mxu0 0.0
    %1256 = vmatpush1.xpose.msra.mxu0 0.0
    %1257 = vmatprep.subr.mxu0 0.0
    %1258 = vmatpush1.xpose.msra.mxu0 0.0
    %1259 = vmatprep.subr.mxu0 0.0
    %1260 = vmatpush1.xpose.msra.mxu0 0.0
    %1261 = vmatprep.subr.mxu0 0.0
    %1262 = vmatpush1.xpose.msra.mxu0 0.0
    %1263 = vmatprep.subr.mxu0 0.0
    %1264 = vmatpush1.xpose.msra.mxu0 0.0
    %1265 = vmatprep.subr.mxu0 0.0
    %1266 = vmatpush1.xpose.msra.mxu0 0.0
    %1267 = vmatprep.subr.mxu0 0.0
    %1268 = vmatpush1.xpose.msra.mxu0 0.0
    %1269 = vmatprep.subr.mxu0 0.0
    %1270 = vmatpush1.xpose.msra.mxu0 0.0
    %1271 = vmatprep.subr.mxu0 0.0
    %1272 = vmatpush1.xpose.msra.mxu0 0.0
    %1273 = vmatprep.subr.mxu0 0.0
    %1274 = vmatpush1.xpose.msra.mxu0 0.0
    %1275 = vmatprep.subr.mxu0 0.0
    %1276 = vmatpush1.xpose.msra.mxu0 0.0
    %1277 = vmatprep.mubr.f32.mxu0 0.0
    %1278 = vmatmul.mubr.f32.gmra.mrb[0].mxu0 %v1181
    %v1279 = vpop.f32.mrb[0].mxu0
    %v1280 = vadd.f32 0.0, %v1279
    %v1281 = vpop.f32.mrb[0].mxu0
    %1282 = vmatprep.mubr.f32.mxu0 0.0
    %1283 = vmatmul.mubr.f32.gmra.mrb[0].mxu0 %v1183
    %v1284 = vpop.f32.mrb[0].mxu0
    %v1285 = vadd.f32 0.0, %v1284
    %v1286 = vpop.f32.mrb[0].mxu0
    %1287 = vmatprep.mubr.f32.mxu0 0.0
    %1288 = vmatmul.mubr.f32.gmra.mrb[0].mxu0 %v1185
    %v1289 = vpop.f32.mrb[0].mxu0
    %v1290 = vadd.f32 0.0, %v1289
    %v1291 = vpop.f32.mrb[0].mxu0
    %1292 = vmatprep.mubr.f32.mxu0 0.0
    %1293 = vmatmul.mubr.f32.gmra.mrb[0].mxu0 %v1187
    %v1294 = vpop.f32.mrb[0].mxu0
    %v1295 = vadd.f32 0.0, %v1294
    %v1296 = vpop.f32.mrb[0].mxu0
    %1297 = vmatprep.mubr.f32.mxu0 0.0
    %1298 = vmatmul.mubr.f32.gmra.mrb[0].mxu0 %v1189
    %v1299 = vpop.f32.mrb[0].mxu0
    %v1300 = vadd.f32 0.0, %v1299
    %v1301 = vpop.f32.mrb[0].mxu0
    %1302 = vmatprep.mubr.f32.mxu0 0.0
    %1303 = vmatmul.mubr.f32.gmra.mrb[0].mxu0 %v1191
    %v1304 = vpop.f32.mrb[0].mxu0
    %v1305 = vadd.f32 0.0, %v1304
    %v1306 = vpop.f32.mrb[0].mxu0
    %1307 = vmatprep.mubr.f32.mxu0 0.0
    %1308 = vmatmul.mubr.f32.gmra.mrb[0].mxu0 %v1193
    %v1309 = vpop.f32.mrb[0].mxu0
    %v1310 = vadd.f32 0.0, %v1309
    %v1311 = vpop.f32.mrb[0].mxu0
    %1312 = vmatprep.mubr.f32.mxu0 0.0
    %1313 = vmatmul.mubr.f32.gmra.mrb[0].mxu0 %v1195
    %v1314 = vpop.f32.mrb[0].mxu0
    %v1315 = vadd.f32 0.0, %v1314
    %v1316 = vpop.f32.mrb[0].mxu0
    %1317 = vdwg.mxu0
    %v1318 = vmul.f32 %v1280, 0.15811388
    %v1319 = vmul.f32 %v1285, 0.15811388
    %v1320 = vmul.f32 %v1290, 0.15811388
    %v1321 = vmul.f32 %v1295, 0.15811388
    %v1322 = vmul.f32 %v1300, 0.15811388
    %v1323 = vmul.f32 %v1305, 0.15811388
    %v1324 = vmul.f32 %v1310, 0.15811388
    %v1325 = vmul.f32 %v1315, 0.15811388
    %v1326 = vlaneseq
    %v1327 = vshrl.u32 %v1326, 7
    %v1328 = vadd.s32 %v1327, 8
    %v1329 = vadd.s32 %v1327, 16
    %v1330 = vadd.s32 %v1327, 24
    %v1331 = vadd.s32 %v1327, 32
    %v1332 = vadd.s32 %v1327, 40
    %v1333 = vadd.s32 %v1327, 48
    %v1334 = vadd.s32 %v1327, 56
    %vm1335 = vcmp.lt.s32.totalorder %v1327, 0
    %v1336 = vsub.s32 0, %v1327
    %v1337 = vsel %vm1335, %v1336, %v1327
    %v1338 = vshrl.u32 %v1337, 3
    %v1339 = vand.u32 %v1337, 7
    %v1340 = vsub.s32 0, %v1339
    %v1341 = vsel %vm1335, %v1340, %v1339
    %vm1342 = vcmp.lt.s32.totalorder %v1328, 0
    %v1343 = vsub.s32 0, %v1328
    %v1344 = vsel %vm1342, %v1343, %v1328
    %v1345 = vshrl.u32 %v1344, 3
    %v1346 = vand.u32 %v1344, 7
    %v1347 = vsub.s32 0, %v1346
    %v1348 = vsel %vm1342, %v1347, %v1346
    %vm1349 = vcmp.lt.s32.totalorder %v1329, 0
    %v1350 = vsub.s32 0, %v1329
    %v1351 = vsel %vm1349, %v1350, %v1329
    %v1352 = vshrl.u32 %v1351, 3
    %v1353 = vand.u32 %v1351, 7
    %v1354 = vsub.s32 0, %v1353
    %v1355 = vsel %vm1349, %v1354, %v1353
    %vm1356 = vcmp.lt.s32.totalorder %v1330, 0
    %v1357 = vsub.s32 0, %v1330
    %v1358 = vsel %vm1356, %v1357, %v1330
    %v1359 = vshrl.u32 %v1358, 3
    %v1360 = vand.u32 %v1358, 7
    %v1361 = vsub.s32 0, %v1360
    %v1362 = vsel %vm1356, %v1361, %v1360
    %vm1363 = vcmp.lt.s32.totalorder %v1331, 0
    %v1364 = vsub.s32 0, %v1331
    %v1365 = vsel %vm1363, %v1364, %v1331
    %v1366 = vshrl.u32 %v1365, 3
    %v1367 = vand.u32 %v1365, 7
    %v1368 = vsub.s32 0, %v1367
    %v1369 = vsel %vm1363, %v1368, %v1367
    %vm1370 = vcmp.lt.s32.totalorder %v1332, 0
    %v1371 = vsub.s32 0, %v1332
    %v1372 = vsel %vm1370, %v1371, %v1332
    %v1373 = vshrl.u32 %v1372, 3
    %v1374 = vand.u32 %v1372, 7
    %v1375 = vsub.s32 0, %v1374
    %v1376 = vsel %vm1370, %v1375, %v1374
    %vm1377 = vcmp.lt.s32.totalorder %v1333, 0
    %v1378 = vsub.s32 0, %v1333
    %v1379 = vsel %vm1377, %v1378, %v1333
    %v1380 = vshrl.u32 %v1379, 3
    %v1381 = vand.u32 %v1379, 7
    %v1382 = vsub.s32 0, %v1381
    %v1383 = vsel %vm1377, %v1382, %v1381
    %vm1384 = vcmp.lt.s32.totalorder %v1334, 0
    %v1385 = vsub.s32 0, %v1334
    %v1386 = vsel %vm1384, %v1385, %v1334
    %v1387 = vshrl.u32 %v1386, 3
    %v1388 = vand.u32 %v1386, 7
    %v1389 = vsub.s32 0, %v1388
    %v1390 = vsel %vm1384, %v1389, %v1388
    %vm1391 = vcmp.ne.s32.totalorder %v1341, 0
    %vm1392 = vcmp.ne.s32.totalorder %v1348, 0
    %vm1393 = vcmp.ne.s32.totalorder %v1355, 0
    %vm1394 = vcmp.ne.s32.totalorder %v1362, 0
    %vm1395 = vcmp.ne.s32.totalorder %v1369, 0
    %vm1396 = vcmp.ne.s32.totalorder %v1376, 0
    %vm1397 = vcmp.ne.s32.totalorder %v1383, 0
    %vm1398 = vcmp.ne.s32.totalorder %v1390, 0
    %vm1399 = vcmp.lt.s32.totalorder %v1341, 0
    %vm1400 = vcmp.lt.s32.totalorder %v1348, 0
    %vm1401 = vcmp.lt.s32.totalorder %v1355, 0
    %vm1402 = vcmp.lt.s32.totalorder %v1362, 0
    %vm1403 = vcmp.lt.s32.totalorder %v1369, 0
    %vm1404 = vcmp.lt.s32.totalorder %v1376, 0
    %vm1405 = vcmp.lt.s32.totalorder %v1383, 0
    %vm1406 = vcmp.lt.s32.totalorder %v1390, 0
    %vm1407 = vmand %vm1399, %vm1391
    %vm1408 = vmand %vm1400, %vm1392
    %vm1409 = vmand %vm1401, %vm1393
    %vm1410 = vmand %vm1402, %vm1394
    %vm1411 = vmand %vm1403, %vm1395
    %vm1412 = vmand %vm1404, %vm1396
    %vm1413 = vmand %vm1405, %vm1397
    %vm1414 = vmand %vm1406, %vm1398
    %v1415 = vadd.s32 %v1341, 8
    %v1416 = vadd.s32 %v1348, 8
    %v1417 = vadd.s32 %v1355, 8
    %v1418 = vadd.s32 %v1362, 8
    %v1419 = vadd.s32 %v1369, 8
    %v1420 = vadd.s32 %v1376, 8
    %v1421 = vadd.s32 %v1383, 8
    %v1422 = vadd.s32 %v1390, 8
    %v1423 = vsel %vm1407, %v1415, %v1341
    %v1424 = vsel %vm1408, %v1416, %v1348
    %v1425 = vsel %vm1409, %v1417, %v1355
    %v1426 = vsel %vm1410, %v1418, %v1362
    %v1427 = vsel %vm1411, %v1419, %v1369
    %v1428 = vsel %vm1412, %v1420, %v1376
    %v1429 = vsel %vm1413, %v1421, %v1383
    %v1430 = vsel %vm1414, %v1422, %v1390
    %v1431 = vlaneseq
    %v1432 = vand.u32 %v1431, 127
    %vm1433 = vcmp.lt.s32.totalorder %v1432, 0
    %v1434 = vsub.s32 0, %v1432
    %v1435 = vsel %vm1433, %v1434, %v1432
    %v1436 = vshrl.u32 %v1435, 3
    %v1437 = vand.u32 %v1435, 7
    %v1438 = vsub.s32 0, %v1437
    %v1439 = vsel %vm1433, %v1438, %v1437
    %vm1440 = vcmp.ne.s32.totalorder %v1439, 0
    %vm1441 = vcmp.lt.s32.totalorder %v1439, 0
    %vm1442 = vmand %vm1441, %vm1440
    %v1443 = vadd.s32 %v1439, 8
    %v1444 = vsel %vm1442, %v1443, %v1439
    %vm1445 = vcmp.eq.s32.totalorder %v1423, %v1444
    %vm1446 = vcmp.eq.s32.totalorder %v1424, %v1444
    %vm1447 = vcmp.eq.s32.totalorder %v1425, %v1444
    %vm1448 = vcmp.eq.s32.totalorder %v1426, %v1444
    %vm1449 = vcmp.eq.s32.totalorder %v1427, %v1444
    %vm1450 = vcmp.eq.s32.totalorder %v1428, %v1444
    %vm1451 = vcmp.eq.s32.totalorder %v1429, %v1444
    %vm1452 = vcmp.eq.s32.totalorder %v1430, %v1444
    %v1453 = vsel %vm1445, %v1318, -1e+30
    %v1454 = vsel %vm1446, %v1319, -1e+30
    %v1455 = vsel %vm1447, %v1320, -1e+30
    %v1456 = vsel %vm1448, %v1321, -1e+30
    %v1457 = vsel %vm1449, %v1322, -1e+30
    %v1458 = vsel %vm1450, %v1323, -1e+30
    %v1459 = vsel %vm1451, %v1324, -1e+30
    %v1460 = vsel %vm1452, %v1325, -1e+30
    %vm1461 = vcmask 523264
    %v1462 = vsel %vm1461, %v1453, -inf
    %1463 = vmax.xlane.f32.xlu0 %v1462
    %v1464 = vpop.xlane.xlu0 %1463
    %v1465 = vsel %vm1461, %v1454, -inf
    %1466 = vmax.xlane.f32.xlu0 %v1465
    %v1467 = vpop.xlane.xlu0 %1466
    %v1468 = vsel %vm1461, %v1455, -inf
    %1469 = vmax.xlane.f32.xlu0 %v1468
    %v1470 = vpop.xlane.xlu0 %1469
    %v1471 = vsel %vm1461, %v1456, -inf
    %1472 = vmax.xlane.f32.xlu0 %v1471
    %v1473 = vpop.xlane.xlu0 %1472
    %v1474 = vsel %vm1461, %v1457, -inf
    %1475 = vmax.xlane.f32.xlu0 %v1474
    %v1476 = vpop.xlane.xlu0 %1475
    %v1477 = vsel %vm1461, %v1458, -inf
    %1478 = vmax.xlane.f32.xlu0 %v1477
    %v1479 = vpop.xlane.xlu0 %1478
    %v1480 = vsel %vm1461, %v1459, -inf
    %1481 = vmax.xlane.f32.xlu0 %v1480
    %v1482 = vpop.xlane.xlu0 %1481
    %v1483 = vsel %vm1461, %v1460, -inf
    %1484 = vmax.xlane.f32.xlu0 %v1483
    %v1485 = vpop.xlane.xlu0 %1484
    %v1486 = vsub.f32 %v1453, %v1464
    %v1487 = vsub.f32 %v1454, %v1467
    %v1488 = vsub.f32 %v1455, %v1470
    %v1489 = vsub.f32 %v1456, %v1473
    %v1490 = vsub.f32 %v1457, %v1476
    %v1491 = vsub.f32 %v1458, %v1479
    %v1492 = vsub.f32 %v1459, %v1482
    %v1493 = vsub.f32 %v1460, %v1485
    %v1494 = vmul.f32 %v1486, 1.442695
    %v1495 = vpow.pop %v1494
    %v1496 = vmul.f32 %v1487, 1.442695
    %v1497 = vpow.pop %v1496
    %v1498 = vmul.f32 %v1488, 1.442695
    %v1499 = vpow.pop %v1498
    %v1500 = vmul.f32 %v1489, 1.442695
    %v1501 = vpow.pop %v1500
    %v1502 = vmul.f32 %v1490, 1.442695
    %v1503 = vpow.pop %v1502
    %v1504 = vmul.f32 %v1491, 1.442695
    %v1505 = vpow.pop %v1504
    %v1506 = vmul.f32 %v1492, 1.442695
    %v1507 = vpow.pop %v1506
    %v1508 = vmul.f32 %v1493, 1.442695
    %v1509 = vpow.pop %v1508
    %v1510 = vsel %vm1461, %v1495, 0.0
    %1511 = vadd.xlane.f32.xlu0 %v1510
    %v1512 = vpop.xlane.xlu0 %1511
    %v1513 = vsel %vm1461, %v1497, 0.0
    %1514 = vadd.xlane.f32.xlu0 %v1513
    %v1515 = vpop.xlane.xlu0 %1514
    %v1516 = vsel %vm1461, %v1499, 0.0
    %1517 = vadd.xlane.f32.xlu0 %v1516
    %v1518 = vpop.xlane.xlu0 %1517
    %v1519 = vsel %vm1461, %v1501, 0.0
    %1520 = vadd.xlane.f32.xlu0 %v1519
    %v1521 = vpop.xlane.xlu0 %1520
    %v1522 = vsel %vm1461, %v1503, 0.0
    %1523 = vadd.xlane.f32.xlu0 %v1522
    %v1524 = vpop.xlane.xlu0 %1523
    %v1525 = vsel %vm1461, %v1505, 0.0
    %1526 = vadd.xlane.f32.xlu0 %v1525
    %v1527 = vpop.xlane.xlu0 %1526
    %v1528 = vsel %vm1461, %v1507, 0.0
    %1529 = vadd.xlane.f32.xlu0 %v1528
    %v1530 = vpop.xlane.xlu0 %1529
    %v1531 = vsel %vm1461, %v1509, 0.0
    %1532 = vadd.xlane.f32.xlu0 %v1531
    %v1533 = vpop.xlane.xlu0 %1532
    %v1534 = vrcp.pop %v1512
    %v1535 = vrcp.pop %v1515
    %v1536 = vrcp.pop %v1518
    %v1537 = vrcp.pop %v1521
    %v1538 = vrcp.pop %v1524
    %v1539 = vrcp.pop %v1527
    %v1540 = vrcp.pop %v1530
    %v1541 = vrcp.pop %v1533
    %v1542 = vmul.f32 %v1495, %v1534
    %v1543 = vmul.f32 %v1497, %v1535
    %v1544 = vmul.f32 %v1499, %v1536
    %v1545 = vmul.f32 %v1501, %v1537
    %v1546 = vmul.f32 %v1503, %v1538
    %v1547 = vmul.f32 %v1505, %v1539
    %v1548 = vmul.f32 %v1507, %v1540
    %v1549 = vmul.f32 %v1509, %v1541
    %vm1550 = vcmp.eq.s32.totalorder %v1444, %v1327
    %v1551 = vsel %vm1550, 1, 0
    %v1552 = vcvt.s32.f32 %v1551
    %v1554 = vsel %vm1461, %v1552, 0
    %1556 = vmatprep.subr.mxu0 0.0
    %1557 = vmatpush1.msra.mxu0 %v1542
    %1558 = vmatprep.subr.mxu0 0.0
    %1559 = vmatpush1.msra.mxu0 %v1543
    %1560 = vmatprep.subr.mxu0 0.0
    %1561 = vmatpush1.msra.mxu0 %v1544
    %1562 = vmatprep.subr.mxu0 0.0
    %1563 = vmatpush1.msra.mxu0 %v1545
    %1564 = vmatprep.subr.mxu0 0.0
    %1565 = vmatpush1.msra.mxu0 %v1546
    %1566 = vmatprep.subr.mxu0 0.0
    %1567 = vmatpush1.msra.mxu0 %v1547
    %1568 = vmatprep.subr.mxu0 0.0
    %1569 = vmatpush1.msra.mxu0 %v1548
    %1570 = vmatprep.subr.mxu0 0.0
    %1571 = vmatpush1.msra.mxu0 %v1549
    %1572 = vmatprep.subr.mxu0 0.0
    %1573 = vmatpush1.msra.mxu0 0.0
    %1574 = vmatprep.subr.mxu0 0.0
    %1575 = vmatpush1.msra.mxu0 0.0
    %1576 = vmatprep.subr.mxu0 0.0
    %1577 = vmatpush1.msra.mxu0 0.0
    %1578 = vmatprep.subr.mxu0 0.0
    %1579 = vmatpush1.msra.mxu0 0.0
    %1580 = vmatprep.subr.mxu0 0.0
    %1581 = vmatpush1.msra.mxu0 0.0
    %1582 = vmatprep.subr.mxu0 0.0
    %1583 = vmatpush1.msra.mxu0 0.0
    %1584 = vmatprep.subr.mxu0 0.0
    %1585 = vmatpush1.msra.mxu0 0.0
    %1586 = vmatprep.subr.mxu0 0.0
    %1587 = vmatpush1.msra.mxu0 0.0
    %1588 = vmatprep.subr.mxu0 0.0
    %1589 = vmatpush1.msra.mxu0 0.0
    %1590 = vmatprep.subr.mxu0 0.0
    %1591 = vmatpush1.msra.mxu0 0.0
    %1592 = vmatprep.subr.mxu0 0.0
    %1593 = vmatpush1.msra.mxu0 0.0
    %1594 = vmatprep.subr.mxu0 0.0
    %1595 = vmatpush1.msra.mxu0 0.0
    %1596 = vmatprep.subr.mxu0 0.0
    %1597 = vmatpush1.msra.mxu0 0.0
    %1598 = vmatprep.subr.mxu0 0.0
    %1599 = vmatpush1.msra.mxu0 0.0
    %1600 = vmatprep.subr.mxu0 0.0
    %1601 = vmatpush1.msra.mxu0 0.0
    %1602 = vmatprep.subr.mxu0 0.0
    %1603 = vmatpush1.msra.mxu0 0.0
    %1604 = vmatprep.subr.mxu0 0.0
    %1605 = vmatpush1.msra.mxu0 0.0
    %1606 = vmatprep.subr.mxu0 0.0
    %1607 = vmatpush1.msra.mxu0 0.0
    %1608 = vmatprep.subr.mxu0 0.0
    %1609 = vmatpush1.msra.mxu0 0.0
    %1610 = vmatprep.subr.mxu0 0.0
    %1611 = vmatpush1.msra.mxu0 0.0
    %1612 = vmatprep.subr.mxu0 0.0
    %1613 = vmatpush1.msra.mxu0 0.0
    %1614 = vmatprep.subr.mxu0 0.0
    %1615 = vmatpush1.msra.mxu0 0.0
    %1616 = vmatprep.subr.mxu0 0.0
    %1617 = vmatpush1.msra.mxu0 0.0
    %1618 = vmatprep.subr.mxu0 0.0
    %1619 = vmatpush1.msra.mxu0 0.0
    %1620 = vmatprep.mubr.f32.mxu0 0.0
    %1621 = vmatmul.mubr.f32.gmra.mrb[0].mxu0 %v1554
    %v1622 = vpop.f32.mrb[0].mxu0
    %v1623 = vadd.f32 0.0, %v1622
    %v1624 = vpop.f32.mrb[0].mxu0
    %1625 = vdwg.mxu0
    %1626 = vrot.lane.b32.xlu0 %v1119, 48
    %v1627 = vpop.permute.xlu0 %1626
    %1628 = vrot.lane.b32.xlu0 %v1124, 48
    %v1629 = vpop.permute.xlu0 %1628
    %1630 = vrot.lane.b32.xlu0 %v1129, 48
    %v1631 = vpop.permute.xlu0 %1630
    %1632 = vrot.lane.b32.xlu0 %v1134, 48
    %v1633 = vpop.permute.xlu0 %1632
    %1634 = vrot.lane.b32.xlu0 %v1139, 48
    %v1635 = vpop.permute.xlu0 %1634
    %1636 = vrot.lane.b32.xlu0 %v1144, 48
    %v1637 = vpop.permute.xlu0 %1636
    %1638 = vrot.lane.b32.xlu0 %v1149, 48
    %v1639 = vpop.permute.xlu0 %1638
    %1640 = vrot.lane.b32.xlu0 %v1154, 48
    %v1641 = vpop.permute.xlu0 %1640
    %v1651 = vsel %vm1461, %v1623, 0
    %1653 = vmatprep.subr.mxu0 0.0
    %1654 = vmatpush1.msra.mxu0 %v1627
    %1655 = vmatprep.subr.mxu0 0.0
    %1656 = vmatpush1.msra.mxu0 %v1629
    %1657 = vmatprep.subr.mxu0 0.0
    %1658 = vmatpush1.msra.mxu0 %v1631
    %1659 = vmatprep.subr.mxu0 0.0
    %1660 = vmatpush1.msra.mxu0 %v1633
    %1661 = vmatprep.subr.mxu0 0.0
    %1662 = vmatpush1.msra.mxu0 %v1635
    %1663 = vmatprep.subr.mxu0 0.0
    %1664 = vmatpush1.msra.mxu0 %v1637
    %1665 = vmatprep.subr.mxu0 0.0
    %1666 = vmatpush1.msra.mxu0 %v1639
    %1667 = vmatprep.subr.mxu0 0.0
    %1668 = vmatpush1.msra.mxu0 %v1641
    %1669 = vmatprep.subr.mxu0 0.0
    %1670 = vmatpush1.msra.mxu0 0.0
    %1671 = vmatprep.subr.mxu0 0.0
    %1672 = vmatpush1.msra.mxu0 0.0
    %1673 = vmatprep.subr.mxu0 0.0
    %1674 = vmatpush1.msra.mxu0 0.0
    %1675 = vmatprep.subr.mxu0 0.0
    %1676 = vmatpush1.msra.mxu0 0.0
    %1677 = vmatprep.subr.mxu0 0.0
    %1678 = vmatpush1.msra.mxu0 0.0
    %1679 = vmatprep.subr.mxu0 0.0
    %1680 = vmatpush1.msra.mxu0 0.0
    %1681 = vmatprep.subr.mxu0 0.0
    %1682 = vmatpush1.msra.mxu0 0.0
    %1683 = vmatprep.subr.mxu0 0.0
    %1684 = vmatpush1.msra.mxu0 0.0
    %1685 = vmatprep.subr.mxu0 0.0
    %1686 = vmatpush1.msra.mxu0 0.0
    %1687 = vmatprep.subr.mxu0 0.0
    %1688 = vmatpush1.msra.mxu0 0.0
    %1689 = vmatprep.subr.mxu0 0.0
    %1690 = vmatpush1.msra.mxu0 0.0
    %1691 = vmatprep.subr.mxu0 0.0
    %1692 = vmatpush1.msra.mxu0 0.0
    %1693 = vmatprep.subr.mxu0 0.0
    %1694 = vmatpush1.msra.mxu0 0.0
    %1695 = vmatprep.subr.mxu0 0.0
    %1696 = vmatpush1.msra.mxu0 0.0
    %1697 = vmatprep.subr.mxu0 0.0
    %1698 = vmatpush1.msra.mxu0 0.0
    %1699 = vmatprep.subr.mxu0 0.0
    %1700 = vmatpush1.msra.mxu0 0.0
    %1701 = vmatprep.subr.mxu0 0.0
    %1702 = vmatpush1.msra.mxu0 0.0
    %1703 = vmatprep.subr.mxu0 0.0
    %1704 = vmatpush1.msra.mxu0 0.0
    %1705 = vmatprep.subr.mxu0 0.0
    %1706 = vmatpush1.msra.mxu0 0.0
    %1707 = vmatprep.subr.mxu0 0.0
    %1708 = vmatpush1.msra.mxu0 0.0
    %1709 = vmatprep.subr.mxu0 0.0
    %1710 = vmatpush1.msra.mxu0 0.0
    %1711 = vmatprep.subr.mxu0 0.0
    %1712 = vmatpush1.msra.mxu0 0.0
    %1713 = vmatprep.subr.mxu0 0.0
    %1714 = vmatpush1.msra.mxu0 0.0
    %1715 = vmatprep.subr.mxu0 0.0
    %1716 = vmatpush1.msra.mxu0 0.0
    %1717 = vmatprep.mubr.f32.mxu0 0.0
    %1718 = vmatmul.mubr.f32.gmra.mrb[0].mxu0 %v1651
    %v1719 = vpop.f32.mrb[0].mxu0
    %v1720 = vadd.f32 0.0, %v1719
    %v1721 = vpop.f32.mrb[0].mxu0
    %1722 = vdwg.mxu0
    %v1723 = vld [vmem:[%s8] sm:$0xff]
    %v1724 = vld [vmem:[%s8 + $0x8] sm:$0xff]
    %v1725 = vld [vmem:[%s8 + $0x10] sm:$0xff]
    %v1726 = vld [vmem:[%s8 + $0x18] sm:$0xff]
    %v1727 = vld [vmem:[%s8 + $0x20] sm:$0xff]
    %v1728 = vld [vmem:[%s1] sm:$0xff]
    %v1729 = vld [vmem:[%s9] sm:$0x7]
    %vm1730 = vcmask 23552
    %v1732 = vsel %vm1730, %v1728, 0
    %vm1734 = vcmask 1042432
    %v1736 = vsel %vm1734, %v1729, 0
    %1738 = vmatprep.subr.mxu0 0.0
    %1739 = vmatpush1.msra.mxu0 %v1736
    %1740 = vmatprep.subr.mxu0 0.0
    %1741 = vmatpush1.msra.mxu0 0.0
    %1742 = vmatprep.subr.mxu0 0.0
    %1743 = vmatpush1.msra.mxu0 0.0
    %1744 = vmatprep.subr.mxu0 0.0
    %1745 = vmatpush1.msra.mxu0 0.0
    %1746 = vmatprep.subr.mxu0 0.0
    %1747 = vmatpush1.msra.mxu0 0.0
    %1748 = vmatprep.subr.mxu0 0.0
    %1749 = vmatpush1.msra.mxu0 0.0
    %1750 = vmatprep.subr.mxu0 0.0
    %1751 = vmatpush1.msra.mxu0 0.0
    %1752 = vmatprep.subr.mxu0 0.0
    %1753 = vmatpush1.msra.mxu0 0.0
    %1754 = vmatprep.subr.mxu0 0.0
    %1755 = vmatpush1.msra.mxu0 0.0
    %1756 = vmatprep.subr.mxu0 0.0
    %1757 = vmatpush1.msra.mxu0 0.0
    %1758 = vmatprep.subr.mxu0 0.0
    %1759 = vmatpush1.msra.mxu0 0.0
    %1760 = vmatprep.subr.mxu0 0.0
    %1761 = vmatpush1.msra.mxu0 0.0
    %1762 = vmatprep.subr.mxu0 0.0
    %1763 = vmatpush1.msra.mxu0 0.0
    %1764 = vmatprep.subr.mxu0 0.0
    %1765 = vmatpush1.msra.mxu0 0.0
    %1766 = vmatprep.subr.mxu0 0.0
    %1767 = vmatpush1.msra.mxu0 0.0
    %1768 = vmatprep.subr.mxu0 0.0
    %1769 = vmatpush1.msra.mxu0 0.0
    %1770 = vmatprep.subr.mxu0 0.0
    %1771 = vmatpush1.msra.mxu0 0.0
    %1772 = vmatprep.subr.mxu0 0.0
    %1773 = vmatpush1.msra.mxu0 0.0
    %1774 = vmatprep.subr.mxu0 0.0
    %1775 = vmatpush1.msra.mxu0 0.0
    %1776 = vmatprep.subr.mxu0 0.0
    %1777 = vmatpush1.msra.mxu0 0.0
    %1778 = vmatprep.subr.mxu0 0.0
    %1779 = vmatpush1.msra.mxu0 0.0
    %1780 = vmatprep.subr.mxu0 0.0
    %1781 = vmatpush1.msra.mxu0 0.0
    %1782 = vmatprep.subr.mxu0 0.0
    %1783 = vmatpush1.msra.mxu0 0.0
    %1784 = vmatprep.subr.mxu0 0.0
    %1785 = vmatpush1.msra.mxu0 0.0
    %1786 = vmatprep.subr.mxu0 0.0
    %1787 = vmatpush1.msra.mxu0 0.0
    %1788 = vmatprep.subr.mxu0 0.0
    %1789 = vmatpush1.msra.mxu0 0.0
    %1790 = vmatprep.subr.mxu0 0.0
    %1791 = vmatpush1.msra.mxu0 0.0
    %1792 = vmatprep.subr.mxu0 0.0
    %1793 = vmatpush1.msra.mxu0 0.0
    %1794 = vmatprep.subr.mxu0 0.0
    %1795 = vmatpush1.msra.mxu0 0.0
    %1796 = vmatprep.subr.mxu0 0.0
    %1797 = vmatpush1.msra.mxu0 0.0
    %1798 = vmatprep.subr.mxu0 0.0
    %1799 = vmatpush1.msra.mxu0 0.0
    %1800 = vmatprep.subr.mxu0 0.0
    %1801 = vmatpush1.msra.mxu0 0.0
    %1802 = vmatprep.mubr.f32.mxu0 0.0
    %1803 = vmatmul.mubr.f32.gmra.mrb[0].mxu0 %v1732
    %v1804 = vpop.f32.mrb[0].mxu0
    %v1805 = vadd.f32 0.0, %v1804
    %v1806 = vpop.f32.mrb[0].mxu0
    %1807 = vdwg.mxu0
    %v1809 = vsel %vm210, %v1720, 0
    %1811 = vmatprep.subr.mxu0 0.0
    %1812 = vmatpush1.msra.mxu0 %v1723
    %1813 = vmatprep.subr.mxu0 0.0
    %1814 = vmatpush1.msra.mxu0 %v1724
    %1815 = vmatprep.subr.mxu0 0.0
    %1816 = vmatpush1.msra.mxu0 %v1725
    %1817 = vmatprep.subr.mxu0 0.0
    %1818 = vmatpush1.msra.mxu0 %v1726
    %1819 = vmatprep.subr.mxu0 0.0
    %1820 = vmatpush1.msra.mxu0 %v1727
    %1821 = vmatprep.subr.mxu0 0.0
    %1822 = vmatpush1.msra.mxu0 0.0
    %1823 = vmatprep.subr.mxu0 0.0
    %1824 = vmatpush1.msra.mxu0 0.0
    %1825 = vmatprep.subr.mxu0 0.0
    %1826 = vmatpush1.msra.mxu0 0.0
    %1827 = vmatprep.subr.mxu0 0.0
    %1828 = vmatpush1.msra.mxu0 0.0
    %1829 = vmatprep.subr.mxu0 0.0
    %1830 = vmatpush1.msra.mxu0 0.0
    %1831 = vmatprep.subr.mxu0 0.0
    %1832 = vmatpush1.msra.mxu0 0.0
    %1833 = vmatprep.subr.mxu0 0.0
    %1834 = vmatpush1.msra.mxu0 0.0
    %1835 = vmatprep.subr.mxu0 0.0
    %1836 = vmatpush1.msra.mxu0 0.0
    %1837 = vmatprep.subr.mxu0 0.0
    %1838 = vmatpush1.msra.mxu0 0.0
    %1839 = vmatprep.subr.mxu0 0.0
    %1840 = vmatpush1.msra.mxu0 0.0
    %1841 = vmatprep.subr.mxu0 0.0
    %1842 = vmatpush1.msra.mxu0 0.0
    %1843 = vmatprep.subr.mxu0 0.0
    %1844 = vmatpush1.msra.mxu0 0.0
    %1845 = vmatprep.subr.mxu0 0.0
    %1846 = vmatpush1.msra.mxu0 0.0
    %1847 = vmatprep.subr.mxu0 0.0
    %1848 = vmatpush1.msra.mxu0 0.0
    %1849 = vmatprep.subr.mxu0 0.0
    %1850 = vmatpush1.msra.mxu0 0.0
    %1851 = vmatprep.subr.mxu0 0.0
    %1852 = vmatpush1.msra.mxu0 0.0
    %1853 = vmatprep.subr.mxu0 0.0
    %1854 = vmatpush1.msra.mxu0 0.0
    %1855 = vmatprep.subr.mxu0 0.0
    %1856 = vmatpush1.msra.mxu0 0.0
    %1857 = vmatprep.subr.mxu0 0.0
    %1858 = vmatpush1.msra.mxu0 0.0
    %1859 = vmatprep.subr.mxu0 0.0
    %1860 = vmatpush1.msra.mxu0 0.0
    %1861 = vmatprep.subr.mxu0 0.0
    %1862 = vmatpush1.msra.mxu0 0.0
    %1863 = vmatprep.subr.mxu0 0.0
    %1864 = vmatpush1.msra.mxu0 0.0
    %1865 = vmatprep.subr.mxu0 0.0
    %1866 = vmatpush1.msra.mxu0 0.0
    %1867 = vmatprep.subr.mxu0 0.0
    %1868 = vmatpush1.msra.mxu0 0.0
    %1869 = vmatprep.subr.mxu0 0.0
    %1870 = vmatpush1.msra.mxu0 0.0
    %1871 = vmatprep.subr.mxu0 0.0
    %1872 = vmatpush1.msra.mxu0 0.0
    %1873 = vmatprep.subr.mxu0 0.0
    %1874 = vmatpush1.msra.mxu0 0.0
    %1875 = vmatprep.mubr.f32.mxu0 0.0
    %1876 = vmatmul.mubr.f32.gmra.mrb[0].mxu0 %v1809
    %v1877 = vpop.f32.mrb[0].mxu0
    %v1878 = vadd.f32 %v1805, %v1877
    %v1879 = vpop.f32.mrb[0].mxu0
    %1880 = vdwg.mxu0
    %v1881 = vld [vmem:[%s10] sm:$0x1]
    %v1883 = vlaneseq
    %v1884 = vshrl.u32 %v1883, 7
    %v1885 = vsub.s32 0, %v1884
    %v1886 = vrot.slane %v1881, %v1885
    %v1888 = vadd.f32 %v1878, %v1886
    %v1889 = vtanh.pop %v1888
    %vm1890 = vcmask 408576
    %1891 = vst.msk [vmem:[#allocation5] sm:$0xff] %vm1890, %v1889
    // Predicated region
    $region50: #{tpu_custom_call.1} parent=1 // pred_check
      _
    $region51: #{tpu_custom_call.1} parent=1 // pred_check_branch
      %1893 = sbr.rel (0) target = $region53
    $region52: #{tpu_custom_call.1} parent=1 // pred_region
      %s1895 = ssub.s32 128, 128
      %1896 = vsyncadd [#allocation4], %s1895
      %s1898 = sshll.u32 [#allocation5], 4
      %s1899 = int_to_ptr.vmem [resolvable:$true] %s1898
      %1901 = dma.vmem_to_hbm [thread:$0]  %s1899, 128, %s11, [#allocation4]
    $region53: #{tpu_custom_call.1} parent=1 // pred_fallthru
      _
    // Predicated region
    $region54: #{tpu_custom_call.1} parent=1 // pred_check
      _
    $region55: #{tpu_custom_call.1} parent=1 // pred_check_branch
      %1903 = sbr.rel (0) target = $region57
    $region56: #{tpu_custom_call.1} parent=1 // pred_region
      %s1905 = ssub.s32 128, 128
      %1906 = vsyncadd [#allocation7], %s1905
      %s1908 = sshll.u32 [#allocation6], 4
      %s1909 = int_to_ptr.vmem [resolvable:$true] %s1908
      %1911 = dma.vmem_to_hbm [thread:$0]  %s1909, 128, %s12, [#allocation7]
    $region57: #{tpu_custom_call.1} parent=1 // pred_fallthru
      _
    // Predicated region
    $region58: #{tpu_custom_call.1} parent=1 // pred_check
      _
    $region59: #{tpu_custom_call.1} parent=1 // pred_check_branch
      %1913 = sbr.rel (0) target = $region61
    $region60: #{tpu_custom_call.1} parent=1 // pred_region
      %1914 = dma.done [#allocation4], 128
    $region61: #{tpu_custom_call.1} parent=1 // pred_fallthru
      _
    // Predicated region
    $region62: #{tpu_custom_call.1} parent=1 // pred_check
      _
    $region63: #{tpu_custom_call.1} parent=1 // pred_check_branch
      %1916 = sbr.rel (0) target = $region65
    $region64: #{tpu_custom_call.1} parent=1 // pred_region
      %1917 = dma.done [#allocation7], 128
    $region65: #{tpu_custom_call.1} parent=1 // pred_fallthru
      _
    %1918 = vsyncpa [#allocation3], 1
    %1919 = vsyncpa [#allocation4], 1
    %1920 = vsyncpa [#allocation7], 1

</llo_original>
